<compile_context>
chip_gen: v7x
topology: tpu7x:2x2x1
jax: 0.10.0
libtpu: 0.0.40
codegen_flags: <defaults>
</compile_context>

<pallas_src>
import functools

import jax
import jax.numpy as jnp
from jax import lax
from jax.experimental import pallas as pl
from jax.experimental.pallas import tpu as pltpu


# -----------------------------------------------------------------------------
# Helpers
# -----------------------------------------------------------------------------
_LANE = 128  # lane-dense padding multiple (also MXU-friendly)


def _ru(n, m):
    return ((n + m - 1) // m) * m


def _pad2(x, rows, cols):
    x = jnp.asarray(x, dtype=jnp.float32)
    return jnp.pad(x, ((0, rows - x.shape[0]), (0, cols - x.shape[1])))


def _full_spec(shape):
    # grid=(1,): single full-array block; block_shape == array shape so the
    # (8,128) divisibility rule is trivially satisfied.
    return pl.BlockSpec(shape, lambda i: tuple(0 for _ in shape))


def _cost(flops, in_arrays, out_bytes, transcendentals=0):
    bytes_accessed = int(
        sum(int(a.size) * a.dtype.itemsize for a in in_arrays) + out_bytes
    )
    return pl.CostEstimate(
        flops=int(flops),
        transcendentals=int(transcendentals),
        bytes_accessed=bytes_accessed,
    )


_COMPILER_PARAMS = pltpu.CompilerParams(dimension_semantics=("arbitrary",))


# -----------------------------------------------------------------------------
# Fused Pallas kernel: entire MultiLevelGCN forward in one call
# -----------------------------------------------------------------------------
def _fused_mlgcn_kernel(*refs, num_mid, k, xw0_first, xw1_first,
                        num_classes, log_softmax):
    """Full forward.

    refs layout:
      [a0, x, w0, b0, p0t] + [a_i, p_i^T]*num_mid + [a_last, w1, b1]
      + [out_ref (f32 logits), emb_ref (f32 embedding)]
    bf16 matmul inputs, f32 MXU accumulation throughout.
    """
    a0_ref, x_ref, w0_ref, b0_ref, p0t_ref = refs[:5]
    mid_refs = refs[5:5 + 2 * num_mid]
    a_last_ref, w1_ref, b1_ref = refs[5 + 2 * num_mid:8 + 2 * num_mid]
    out_ref = refs[8 + 2 * num_mid]
    emb_ref = refs[9 + 2 * num_mid]

    bf16 = jnp.bfloat16

    # ---- level 0: GraphConv(in, hidden, relu) + P0^T projection -------------
    if xw0_first:
        t = jnp.dot(x_ref[...], w0_ref[...], preferred_element_type=jnp.float32)
        h = jnp.dot(a0_ref[...], t.astype(bf16),
                    preferred_element_type=jnp.float32)
    else:
        t = jnp.dot(a0_ref[...], x_ref[...], preferred_element_type=jnp.float32)
        h = jnp.dot(t.astype(bf16), w0_ref[...],
                    preferred_element_type=jnp.float32)
    h = jnp.maximum(h + b0_ref[...], 0.0)                 # bias (f32) + relu
    h = jnp.dot(p0t_ref[...], h.astype(bf16), preferred_element_type=jnp.float32)

    # emb emitted in-kernel, already f32 (free store-slot epilogue).
    emb_ref[...] = h.astype(emb_ref.dtype)

    hb = h.astype(bf16)

    # ---- middle levels: SmoothFilter^k + P_i^T, fully VMEM-resident ---------
    for li in range(num_mid):
        a_ref = mid_refs[2 * li]
        pt_ref = mid_refs[2 * li + 1]

        def hop(_, hc, a_ref=a_ref):
            # carry state in bf16: the f32 value would be discarded by the
            # next hop's bf16 cast anyway (halves intermediate footprint).
            return jnp.dot(a_ref[...], hc,
                           preferred_element_type=jnp.float32).astype(bf16)

        hb = lax.fori_loop(0, k, hop, hb, unroll=True)
        hb = jnp.dot(pt_ref[...], hb,
                     preferred_element_type=jnp.float32).astype(bf16)

    # dropout(p=0.5): eval-mode identity (see TODO at top).

    # ---- final GraphConv(hidden, classes) [+ optional masked log_softmax] ---
    if xw1_first:
        t = jnp.dot(hb, w1_ref[...], preferred_element_type=jnp.float32)
        out = jnp.dot(a_last_ref[...], t.astype(bf16),
                      preferred_element_type=jnp.float32)
    else:
        t = jnp.dot(a_last_ref[...], hb, preferred_element_type=jnp.float32)
        out = jnp.dot(t.astype(bf16), w1_ref[...],
                      preferred_element_type=jnp.float32)
    out = out + b1_ref[...]

    if log_softmax:
        # Fused, masked log_softmax over the valid (unpadded) class columns.
        mask = lax.broadcasted_iota(jnp.int32, out.shape, 1) < num_classes
        masked = jnp.where(mask, out, jnp.float32(-1e30))
        m = jnp.max(masked, axis=1, keepdims=True)
        e = jnp.where(mask, jnp.exp(out - m), 0.0)
        lse = m + jnp.log(jnp.sum(e, axis=1, keepdims=True))
        out = out - lse

    out_ref[...] = out.astype(out_ref.dtype)


def _call_fused(prep, *, k, log_softmax):
    adjs, projT = prep["adjs"], prep["projT"]
    _, _, cls = prep["dims"]
    in_p, hid_p, cls_p = prep["pdims"]
    n_pad = prep["n_pad"]

    num_mid = len(projT) - 1
    # Matmul association decided from PADDED dims (MXU multiplies padded shapes).
    xw0_first = hid_p <= in_p
    xw1_first = cls_p <= hid_p

    inputs = [adjs[0], prep["x"], prep["w0"], prep["b0"], projT[0]]
    for i in range(1, len(projT)):
        inputs += [adjs[i], projT[i]]
    inputs += [adjs[-1], prep["w1"], prep["b1"]]

    n0p, n1p, n_last_p = n_pad[0], n_pad[1], n_pad[-1]

    # FLOP estimate for the scheduler.
    if xw0_first:
        flops = 2 * n0p * in_p * hid_p + 2 * n0p * n0p * hid_p
    else:
        flops = 2 * n0p * n0p * in_p + 2 * n0p * in_p * hid_p
    flops += 2 * n1p * n0p * hid_p
    for i in range(1, len(projT)):
        nip, njp = n_pad[i], n_pad[i + 1]
        flops += 2 * k * nip * nip * hid_p + 2 * njp * nip * hid_p
    if xw1_first:
        flops += 2 * n_last_p * hid_p * cls_p + 2 * n_last_p * n_last_p * cls_p
    else:
        flops += 2 * n_last_p * n_last_p * hid_p + 2 * n_last_p * hid_p * cls_p

    out_bytes = (n_last_p * cls_p + n1p * hid_p) * 4
    trans = 2 * n_last_p * cls_p if log_softmax else 0

    kernel = functools.partial(
        _fused_mlgcn_kernel, num_mid=num_mid, k=k,
        xw0_first=xw0_first, xw1_first=xw1_first,
        num_classes=cls, log_softmax=log_softmax)

    return pl.pallas_call(
        kernel,
        out_shape=(jax.ShapeDtypeStruct((n_last_p, cls_p), jnp.float32),
                   jax.ShapeDtypeStruct((n1p, hid_p), jnp.float32)),
        grid=(1,),
        in_specs=[_full_spec(tuple(a.shape)) for a in inputs],
        out_specs=(_full_spec((n_last_p, cls_p)), _full_spec((n1p, hid_p))),
        compiler_params=_COMPILER_PARAMS,
        cost_estimate=_cost(flops, inputs, out_bytes, transcendentals=trans),
    )(*inputs)


# -----------------------------------------------------------------------------
# Glue: graph normalization, one-time preparation, full forward
# -----------------------------------------------------------------------------
def sym_normalize(adj):
    """D^{-1/2} (A + I) D^{-1/2} with self-loops, as DGL GraphConv norm='both'."""
    n = adj.shape[0]
    a = adj + adj.T
    a = jnp.where(a > 0, 1.0, 0.0) + jnp.eye(n, dtype=jnp.float32)
    a = jnp.minimum(a, 1.0)
    deg = jnp.clip(a.sum(axis=1), 1.0, None)
    d_inv_sqrt = 1.0 / jnp.sqrt(deg)
    return (a * d_inv_sqrt[:, None]) * d_inv_sqrt[None, :]


def prepare_model(features, adjs_norm, projections, params,
                  compute_dtype=jnp.bfloat16):
    """One-time padding / casting / transpose hoisting (NOT per forward)."""
    w0, b0, w1, b1 = params
    n_nodes = [int(a.shape[0]) for a in adjs_norm]
    n_pad = [_ru(n, _LANE) for n in n_nodes]

    in_dim = int(features.shape[1])
    hid = int(w0.shape[1])
    cls = int(w1.shape[1])
    in_p, hid_p, cls_p = _ru(in_dim, _LANE), _ru(hid, _LANE), _ru(cls, _LANE)

    prep = {
        "n_nodes": n_nodes,
        "n_pad": n_pad,
        "dims": (in_dim, hid, cls),
        "pdims": (in_p, hid_p, cls_p),
        "x": _pad2(features, n_pad[0], in_p).astype(compute_dtype),
        "adjs": [
            _pad2(a, n_pad[i], n_pad[i]).astype(compute_dtype)
            for i, a in enumerate(adjs_norm)
        ],
        # Hoisted transposes: padded P_i^T computed once.
        "projT": [
            _pad2(jnp.asarray(p, jnp.float32).T, n_pad[i + 1], n_pad[i])
            .astype(compute_dtype)
            for i, p in enumerate(projections)
        ],
        "w0": _pad2(w0, in_p, hid_p).astype(compute_dtype),
        "b0": _pad2(jnp.reshape(b0, (1, -1)), 1, hid_p).astype(jnp.float32),
        "w1": _pad2(w1, hid_p, cls_p).astype(compute_dtype),
        "b1": _pad2(jnp.reshape(b1, (1, -1)), 1, cls_p).astype(jnp.float32),
    }
    return prep


def multi_level_gcn_forward(prep, smooth_filter_k=2, log_softmax=False):
    n_nodes = prep["n_nodes"]
    _, hid, cls = prep["dims"]

    # One fused pallas_call for the whole forward; emb comes out f32 in-kernel.
    logits_padded, emb_padded = _call_fused(
        prep, k=smooth_filter_k, log_softmax=log_softmax)

    # Slice padding off once at the end (both already f32).
    out = logits_padded[: n_nodes[-1], :cls]
    emb = emb_padded[: n_nodes[1], :hid]
    return out, emb


# -----------------------------------------------------------------------------
# Main
# -----------------------------------------------------------------------------
if __name__ == "__main__":
    key = jax.random.PRNGKey(0)

    # Small synthetic shapes consistent with the module
    n0, n1, n2 = 64, 32, 16          # node counts per coarsening level
    in_dim, num_hidden, num_classes = 16, 32, 8
    smooth_filter_k = 2

    keys = jax.random.split(key, 10)

    # Node features
    features = jax.random.normal(keys[0], (n0, in_dim), dtype=jnp.float32)

    # Random sparse-ish graphs per level (densified), then sym-normalized
    def rand_adj(k, n, p=0.15):
        return (jax.random.uniform(k, (n, n)) < p).astype(jnp.float32)

    adjs_norm = [
        sym_normalize(rand_adj(keys[1], n0)),
        sym_normalize(rand_adj(keys[2], n1)),
        sym_normalize(rand_adj(keys[3], n2)),
    ]

    # Coarsening projection matrices P_i: [n_i, n_{i+1}]
    projections = [
        jax.random.normal(keys[4], (n0, n1), dtype=jnp.float32) * 0.1,
        jax.random.normal(keys[5], (n1, n2), dtype=jnp.float32) * 0.1,
    ]

    # GraphConv parameters (Glorot-ish scale), deterministic
    w0 = jax.random.normal(keys[6], (in_dim, num_hidden), dtype=jnp.float32) \
        * (2.0 / (in_dim + num_hidden)) ** 0.5
    b0 = jnp.zeros((num_hidden,), dtype=jnp.float32)
    w1 = jax.random.normal(keys[7], (num_hidden, num_classes), dtype=jnp.float32) \
        * (2.0 / (num_hidden + num_classes)) ** 0.5
    b1 = jnp.zeros((num_classes,), dtype=jnp.float32)
    params = (w0, b0, w1, b1)

    # One-time preparation (padding, bf16 casts, hoisted P^T, bias reshape).
    prep = prepare_model(features, adjs_norm, projections, params)

    out, emb = multi_level_gcn_forward(
        prep, smooth_filter_k=smooth_filter_k, log_softmax=False)

    jax.block_until_ready(out)
    jax.block_until_ready(emb)

    assert out.shape == (n2, num_classes), out.shape
    assert emb.shape == (n1, num_hidden), emb.shape
    assert jnp.all(jnp.isfinite(out)) and jnp.all(jnp.isfinite(emb))

    print("KERNEL_OK")
</pallas_src>

<mosaic_0001>
module attributes {stable_mosaic.version = 11 : i64} {
  func.func @_fused_mlgcn_kernel(%arg0: i32, %arg1: memref<128x128xbf16, #tpu.memory_space<vmem>>, %arg2: memref<128x128xbf16, #tpu.memory_space<vmem>>, %arg3: memref<128x128xbf16, #tpu.memory_space<vmem>>, %arg4: memref<1x128xf32, #tpu.memory_space<vmem>>, %arg5: memref<128x128xbf16, #tpu.memory_space<vmem>>, %arg6: memref<128x128xbf16, #tpu.memory_space<vmem>>, %arg7: memref<128x128xbf16, #tpu.memory_space<vmem>>, %arg8: memref<128x128xbf16, #tpu.memory_space<vmem>>, %arg9: memref<128x128xbf16, #tpu.memory_space<vmem>>, %arg10: memref<1x128xf32, #tpu.memory_space<vmem>>, %arg11: memref<128x128xf32, #tpu.memory_space<vmem>>, %arg12: memref<128x128xf32, #tpu.memory_space<vmem>>) attributes {dimension_semantics = [#tpu.dimension_semantics<arbitrary>], iteration_bounds = array<i64: 1>, scalar_prefetch = 0 : i64, scratch_operands = 0 : i64, tpu.core_type = #tpu.core_type<tc>, window_params = [{pipeline_mode = #tpu.pipeline_mode<synchronous>, transform_indices = @transform_0, window_bounds = array<i64: 128, 128>}, {pipeline_mode = #tpu.pipeline_mode<synchronous>, transform_indices = @transform_1, window_bounds = array<i64: 128, 128>}, {pipeline_mode = #tpu.pipeline_mode<synchronous>, transform_indices = @transform_2, window_bounds = array<i64: 128, 128>}, {pipeline_mode = #tpu.pipeline_mode<synchronous>, transform_indices = @transform_3, window_bounds = array<i64: 1, 128>}, {pipeline_mode = #tpu.pipeline_mode<synchronous>, transform_indices = @transform_4, window_bounds = array<i64: 128, 128>}, {pipeline_mode = #tpu.pipeline_mode<synchronous>, transform_indices = @transform_5, window_bounds = array<i64: 128, 128>}, {pipeline_mode = #tpu.pipeline_mode<synchronous>, transform_indices = @transform_6, window_bounds = array<i64: 128, 128>}, {pipeline_mode = #tpu.pipeline_mode<synchronous>, transform_indices = @transform_7, window_bounds = array<i64: 128, 128>}, {pipeline_mode = #tpu.pipeline_mode<synchronous>, transform_indices = @transform_8, window_bounds = array<i64: 128, 128>}, {pipeline_mode = #tpu.pipeline_mode<synchronous>, transform_indices = @transform_9, window_bounds = array<i64: 1, 128>}, {pipeline_mode = #tpu.pipeline_mode<synchronous>, transform_indices = @transform_10, window_bounds = array<i64: 128, 128>}, {pipeline_mode = #tpu.pipeline_mode<synchronous>, transform_indices = @transform_11, window_bounds = array<i64: 128, 128>}]} {
    %c0 = arith.constant 0 : index
    %c0_0 = arith.constant 0 : index
    %0 = vector.load %arg2[%c0, %c0_0] : memref<128x128xbf16, #tpu.memory_space<vmem>>, vector<128x128xbf16>
    %c0_1 = arith.constant 0 : index
    %c0_2 = arith.constant 0 : index
    %1 = vector.load %arg3[%c0_1, %c0_2] : memref<128x128xbf16, #tpu.memory_space<vmem>>, vector<128x128xbf16>
    %cst = arith.constant dense<0.000000e+00> : vector<128x128xf32>
    %2 = tpu.matmul %0, %1, %cst {dimension_numbers = #tpu.dot_dimension_numbers<[1], [0], [0], [1], [0, 0, 1, 1], [], []>} : vector<128x128xbf16>, vector<128x128xbf16>, vector<128x128xf32> -> vector<128x128xf32>
    %c0_3 = arith.constant 0 : index
    %c0_4 = arith.constant 0 : index
    %3 = vector.load %arg1[%c0_3, %c0_4] : memref<128x128xbf16, #tpu.memory_space<vmem>>, vector<128x128xbf16>
    %4 = arith.truncf %2 : vector<128x128xf32> to vector<128x128xbf16>
    %cst_5 = arith.constant dense<0.000000e+00> : vector<128x128xf32>
    %5 = tpu.matmul %3, %4, %cst_5 {dimension_numbers = #tpu.dot_dimension_numbers<[1], [0], [0], [1], [0, 0, 1, 1], [], []>} : vector<128x128xbf16>, vector<128x128xbf16>, vector<128x128xf32> -> vector<128x128xf32>
    %c0_6 = arith.constant 0 : index
    %c0_7 = arith.constant 0 : index
    %6 = vector.load %arg4[%c0_6, %c0_7] : memref<1x128xf32, #tpu.memory_space<vmem>>, vector<1x128xf32>
    %7 = vector.broadcast %6 : vector<1x128xf32> to vector<128x128xf32>
    %8 = arith.addf %5, %7 : vector<128x128xf32>
    %cst_8 = arith.constant 0.000000e+00 : f32
    %9 = vector.broadcast %cst_8 : f32 to vector<128x128xf32>
    %10 = arith.maximumf %8, %9 : vector<128x128xf32>
    %c0_9 = arith.constant 0 : index
    %c0_10 = arith.constant 0 : index
    %11 = vector.load %arg5[%c0_9, %c0_10] : memref<128x128xbf16, #tpu.memory_space<vmem>>, vector<128x128xbf16>
    %12 = arith.truncf %10 : vector<128x128xf32> to vector<128x128xbf16>
    %cst_11 = arith.constant dense<0.000000e+00> : vector<128x128xf32>
    %13 = tpu.matmul %11, %12, %cst_11 {dimension_numbers = #tpu.dot_dimension_numbers<[1], [0], [0], [1], [0, 0, 1, 1], [], []>} : vector<128x128xbf16>, vector<128x128xbf16>, vector<128x128xf32> -> vector<128x128xf32>
    %c0_12 = arith.constant 0 : index
    %c0_13 = arith.constant 0 : index
    %14 = vector.load %arg12[%c0_12, %c0_13] : memref<128x128xf32, #tpu.memory_space<vmem>>, vector<128x128xf32>
    tpu.vector_store %arg12[%c0_12, %c0_13], %13 {strides = array<i32>} : memref<128x128xf32, #tpu.memory_space<vmem>>, vector<128x128xf32>,
    %15 = arith.truncf %13 : vector<128x128xf32> to vector<128x128xbf16>
    %c0_i32 = arith.constant 0 : i32
    %c0_14 = arith.constant 0 : index
    %c0_15 = arith.constant 0 : index
    %16 = vector.load %arg6[%c0_14, %c0_15] : memref<128x128xbf16, #tpu.memory_space<vmem>>, vector<128x128xbf16>
    %cst_16 = arith.constant dense<0.000000e+00> : vector<128x128xf32>
    %17 = tpu.matmul %16, %15, %cst_16 {dimension_numbers = #tpu.dot_dimension_numbers<[1], [0], [0], [1], [0, 0, 1, 1], [], []>} : vector<128x128xbf16>, vector<128x128xbf16>, vector<128x128xf32> -> vector<128x128xf32>
    %18 = arith.truncf %17 : vector<128x128xf32> to vector<128x128xbf16>
    %c1_i32 = arith.constant 1 : i32
    %c0_17 = arith.constant 0 : index
    %c0_18 = arith.constant 0 : index
    %19 = vector.load %arg6[%c0_17, %c0_18] : memref<128x128xbf16, #tpu.memory_space<vmem>>, vector<128x128xbf16>
    %cst_19 = arith.constant dense<0.000000e+00> : vector<128x128xf32>
    %20 = tpu.matmul %19, %18, %cst_19 {dimension_numbers = #tpu.dot_dimension_numbers<[1], [0], [0], [1], [0, 0, 1, 1], [], []>} : vector<128x128xbf16>, vector<128x128xbf16>, vector<128x128xf32> -> vector<128x128xf32>
    %21 = arith.truncf %20 : vector<128x128xf32> to vector<128x128xbf16>
    %c0_20 = arith.constant 0 : index
    %c0_21 = arith.constant 0 : index
    %22 = vector.load %arg7[%c0_20, %c0_21] : memref<128x128xbf16, #tpu.memory_space<vmem>>, vector<128x128xbf16>
    %cst_22 = arith.constant dense<0.000000e+00> : vector<128x128xf32>
    %23 = tpu.matmul %22, %21, %cst_22 {dimension_numbers = #tpu.dot_dimension_numbers<[1], [0], [0], [1], [0, 0, 1, 1], [], []>} : vector<128x128xbf16>, vector<128x128xbf16>, vector<128x128xf32> -> vector<128x128xf32>
    %24 = arith.truncf %23 : vector<128x128xf32> to vector<128x128xbf16>
    %c0_23 = arith.constant 0 : index
    %c0_24 = arith.constant 0 : index
    %25 = vector.load %arg9[%c0_23, %c0_24] : memref<128x128xbf16, #tpu.memory_space<vmem>>, vector<128x128xbf16>
    %cst_25 = arith.constant dense<0.000000e+00> : vector<128x128xf32>
    %26 = tpu.matmul %24, %25, %cst_25 {dimension_numbers = #tpu.dot_dimension_numbers<[1], [0], [0], [1], [0, 0, 1, 1], [], []>} : vector<128x128xbf16>, vector<128x128xbf16>, vector<128x128xf32> -> vector<128x128xf32>
    %c0_26 = arith.constant 0 : index
    %c0_27 = arith.constant 0 : index
    %27 = vector.load %arg8[%c0_26, %c0_27] : memref<128x128xbf16, #tpu.memory_space<vmem>>, vector<128x128xbf16>
    %28 = arith.truncf %26 : vector<128x128xf32> to vector<128x128xbf16>
    %cst_28 = arith.constant dense<0.000000e+00> : vector<128x128xf32>
    %29 = tpu.matmul %27, %28, %cst_28 {dimension_numbers = #tpu.dot_dimension_numbers<[1], [0], [0], [1], [0, 0, 1, 1], [], []>} : vector<128x128xbf16>, vector<128x128xbf16>, vector<128x128xf32> -> vector<128x128xf32>
    %c0_29 = arith.constant 0 : index
    %c0_30 = arith.constant 0 : index
    %30 = vector.load %arg10[%c0_29, %c0_30] : memref<1x128xf32, #tpu.memory_space<vmem>>, vector<1x128xf32>
    %31 = vector.broadcast %30 : vector<1x128xf32> to vector<128x128xf32>
    %32 = arith.addf %29, %31 : vector<128x128xf32>
    %c0_31 = arith.constant 0 : index
    %c0_32 = arith.constant 0 : index
    %33 = vector.load %arg11[%c0_31, %c0_32] : memref<128x128xf32, #tpu.memory_space<vmem>>, vector<128x128xf32>
    tpu.vector_store %arg11[%c0_31, %c0_32], %32 {strides = array<i32>} : memref<128x128xf32, #tpu.memory_space<vmem>>, vector<128x128xf32>,
    return
  }
  func.func @transform_0(%arg0: i32) -> (i32, i32) {
    %c0_i32 = arith.constant 0 : i32
    %c0_i32_0 = arith.constant 0 : i32
    %c0_i32_1 = arith.constant 0 : i32
    return %c0_i32, %c0_i32_0 : i32, i32
  }
  func.func @transform_1(%arg0: i32) -> (i32, i32) {
    %c0_i32 = arith.constant 0 : i32
    %c0_i32_0 = arith.constant 0 : i32
    %c0_i32_1 = arith.constant 0 : i32
    return %c0_i32, %c0_i32_0 : i32, i32
  }
  func.func @transform_2(%arg0: i32) -> (i32, i32) {
    %c0_i32 = arith.constant 0 : i32
    %c0_i32_0 = arith.constant 0 : i32
    %c0_i32_1 = arith.constant 0 : i32
    return %c0_i32, %c0_i32_0 : i32, i32
  }
  func.func @transform_3(%arg0: i32) -> (i32, i32) {
    %c0_i32 = arith.constant 0 : i32
    %c0_i32_0 = arith.constant 0 : i32
    %c0_i32_1 = arith.constant 0 : i32
    return %c0_i32, %c0_i32_0 : i32, i32
  }
  func.func @transform_4(%arg0: i32) -> (i32, i32) {
    %c0_i32 = arith.constant 0 : i32
    %c0_i32_0 = arith.constant 0 : i32
    %c0_i32_1 = arith.constant 0 : i32
    return %c0_i32, %c0_i32_0 : i32, i32
  }
  func.func @transform_5(%arg0: i32) -> (i32, i32) {
    %c0_i32 = arith.constant 0 : i32
    %c0_i32_0 = arith.constant 0 : i32
    %c0_i32_1 = arith.constant 0 : i32
    return %c0_i32, %c0_i32_0 : i32, i32
  }
  func.func @transform_6(%arg0: i32) -> (i32, i32) {
    %c0_i32 = arith.constant 0 : i32
    %c0_i32_0 = arith.constant 0 : i32
    %c0_i32_1 = arith.constant 0 : i32
    return %c0_i32, %c0_i32_0 : i32, i32
  }
  func.func @transform_7(%arg0: i32) -> (i32, i32) {
    %c0_i32 = arith.constant 0 : i32
    %c0_i32_0 = arith.constant 0 : i32
    %c0_i32_1 = arith.constant 0 : i32
    return %c0_i32, %c0_i32_0 : i32, i32
  }
  func.func @transform_8(%arg0: i32) -> (i32, i32) {
    %c0_i32 = arith.constant 0 : i32
    %c0_i32_0 = arith.constant 0 : i32
    %c0_i32_1 = arith.constant 0 : i32
    return %c0_i32, %c0_i32_0 : i32, i32
  }
  func.func @transform_9(%arg0: i32) -> (i32, i32) {
    %c0_i32 = arith.constant 0 : i32
    %c0_i32_0 = arith.constant 0 : i32
    %c0_i32_1 = arith.constant 0 : i32
    return %c0_i32, %c0_i32_0 : i32, i32
  }
  func.func @transform_10(%arg0: i32) -> (i32, i32) {
    %c0_i32 = arith.constant 0 : i32
    %c0_i32_0 = arith.constant 0 : i32
    %c0_i32_1 = arith.constant 0 : i32
    return %c0_i32, %c0_i32_0 : i32, i32
  }
  func.func @transform_11(%arg0: i32) -> (i32, i32) {
    %c0_i32 = arith.constant 0 : i32
    %c0_i32_0 = arith.constant 0 : i32
    %c0_i32_1 = arith.constant 0 : i32
    return %c0_i32, %c0_i32_0 : i32, i32
  }
}

</mosaic_0001>

<llo_original>
// kernel: tpu_custom_call.1
$region0: #{tpu_custom_call.1}
  #allocation0 [shape = 'u32[]', space=smem, size = 0x4, offset = 0x4, fixed_abs, tag = 'smem constant byte address 0x4 - core index']
  #allocation1 [shape = 'u32[144,128]{1,0:T(1,128)}', space=vmem, size = 0x12000, scoped, tag = 'internal scratch']
  %s0 = inlined_call_operand.hbm [shape: bf16[128,128], index: 0, kind: input, shape index: {}]
  %s1 = inlined_call_operand.hbm [shape: bf16[128,128], index: 1, kind: input, shape index: {}]
  %s2 = inlined_call_operand.hbm [shape: bf16[128,128], index: 2, kind: input, shape index: {}]
  %s3 = inlined_call_operand.vmem [shape: f32[1,128], index: 3, kind: input, shape index: {}]
  %s4 = inlined_call_operand.hbm [shape: bf16[128,128], index: 4, kind: input, shape index: {}]
  %s5 = inlined_call_operand.hbm [shape: bf16[128,128], index: 5, kind: input, shape index: {}]
  %s6 = inlined_call_operand.hbm [shape: bf16[128,128], index: 6, kind: input, shape index: {}]
  %s7 = inlined_call_operand.hbm [shape: bf16[128,128], index: 7, kind: input, shape index: {}]
  %s8 = inlined_call_operand.hbm [shape: bf16[128,128], index: 8, kind: input, shape index: {}]
  %s9 = inlined_call_operand.vmem [shape: f32[1,128], index: 9, kind: input, shape index: {}]
  %s10 = inlined_call_operand.hbm [shape: f32[128,128], index: 10, kind: output, shape index: {0}]
  %s11 = inlined_call_operand.hbm [shape: f32[128,128], index: 11, kind: output, shape index: {1}]
  %12 = xla_tuple %s10, %s11
  %s13 = sld [smem:[#allocation0]]
  $region90: #{tpu_custom_call.1} parent=0
    _
  %s15 = ssub.s32 1, %s13
  %s16 = scalar_select 0, %s15, %s13
  $region1: #{tpu_custom_call.1} parent=0
    #allocation2 [shape = 'u8[32768]{0}', space=vmem, size = 0x8000, scoped, tag = 'input window, operand 0, single buffered']
    #allocation3 [shape = 's32[1]{0}', space=sflag, size = 0x4, scoped, tag = 'scoped memory for tpu_custom_call.1']
    #allocation4 [shape = 's32[1]{0}', space=sflag, size = 0x4, scoped, tag = 'scoped memory for tpu_custom_call.1']
    #allocation5 [shape = 'u8[32768]{0}', space=vmem, size = 0x8000, scoped, tag = 'input window, operand 1, single buffered']
    #allocation6 [shape = 's32[1]{0}', space=sflag, size = 0x4, scoped, tag = 'scoped memory for tpu_custom_call.1']
    #allocation7 [shape = 'u8[32768]{0}', space=vmem, size = 0x8000, scoped, tag = 'input window, operand 2, single buffered']
    #allocation8 [shape = 'u8[32768]{0}', space=vmem, size = 0x8000, scoped, tag = 'input window, operand 4, single buffered']
    #allocation9 [shape = 's32[1]{0}', space=sflag, size = 0x4, scoped, tag = 'scoped memory for tpu_custom_call.1']
    #allocation10 [shape = 'u8[32768]{0}', space=vmem, size = 0x8000, scoped, tag = 'input window, operand 5, single buffered']
    #allocation11 [shape = 'u8[32768]{0}', space=vmem, size = 0x8000, scoped, tag = 'input window, operand 6, single buffered']
    #allocation12 [shape = 's32[1]{0}', space=sflag, size = 0x4, scoped, tag = 'scoped memory for tpu_custom_call.1']
    #allocation13 [shape = 'u8[32768]{0}', space=vmem, size = 0x8000, scoped, tag = 'input window, operand 7, single buffered']
    #allocation14 [shape = 'u8[32768]{0}', space=vmem, size = 0x8000, scoped, tag = 'input window, operand 8, single buffered']
    #allocation15 [shape = 's32[1]{0}', space=sflag, size = 0x4, scoped, tag = 'scoped memory for tpu_custom_call.1']
    #allocation16 [shape = 'u8[65536]{0}', space=vmem, size = 0x10000, scoped, tag = 'output window, operand 0, single buffered']
    #allocation17 [shape = 'u8[65536]{0}', space=vmem, size = 0x10000, scoped, tag = 'output window, operand 1, single buffered']
    #allocation18 [shape = 's32[1]{0}', space=sflag, size = 0x4, scoped, tag = 'scoped memory for tpu_custom_call.1']
    %17 = vsyncpa [#allocation3], 0
    %18 = vsyncpa [#allocation6], 0
    %19 = vsyncpa [#allocation9], 0
    %20 = vsyncpa [#allocation12], 0
    %21 = vsyncpa [#allocation15], 0
    %22 = vsyncpa [#allocation4], 0
    %23 = vsyncpa [#allocation18], 0
    // Predicated region
    $region2: #{tpu_custom_call.1} parent=1 // pred_check
      _
    $region3: #{tpu_custom_call.1} parent=1 // pred_check_branch
      %25 = sbr.rel (0) target = $region5
    $region4: #{tpu_custom_call.1} parent=1 // pred_region
      %s27 = ssub.s32 1024, 1024
      %28 = vsyncadd [#allocation3], %s27
      %s29 = sshll.u32 [#allocation2], 4
      %s30 = int_to_ptr.vmem [resolvable:$true] %s29
      %35 = dma.hbm_to_vmem [thread:$0]  %s0, 1024, %s30, [#allocation3], 64, 64, 4
    $region5: #{tpu_custom_call.1} parent=1 // pred_fallthru
      _
    // Predicated region
    $region6: #{tpu_custom_call.1} parent=1 // pred_check
      _
    $region7: #{tpu_custom_call.1} parent=1 // pred_check_branch
      %37 = sbr.rel (0) target = $region9
    $region8: #{tpu_custom_call.1} parent=1 // pred_region
      %s39 = ssub.s32 1024, 1024
      %40 = vsyncadd [#allocation6], %s39
      %s41 = sshll.u32 [#allocation5], 4
      %s42 = int_to_ptr.vmem [resolvable:$true] %s41
      %47 = dma.hbm_to_vmem [thread:$0]  %s1, 1024, %s42, [#allocation6], 64, 64, 4
    $region9: #{tpu_custom_call.1} parent=1 // pred_fallthru
      _
    // Predicated region
    $region10: #{tpu_custom_call.1} parent=1 // pred_check
      _
    $region11: #{tpu_custom_call.1} parent=1 // pred_check_branch
      %49 = sbr.rel (0) target = $region13
    $region12: #{tpu_custom_call.1} parent=1 // pred_region
      %s51 = ssub.s32 1024, 1024
      %52 = vsyncadd [#allocation6], %s51
      %s53 = sshll.u32 [#allocation7], 4
      %s54 = int_to_ptr.vmem [resolvable:$true] %s53
      %59 = dma.hbm_to_vmem [thread:$0]  %s2, 1024, %s54, [#allocation6], 64, 64, 4
    $region13: #{tpu_custom_call.1} parent=1 // pred_fallthru
      _
    // Predicated region
    $region14: #{tpu_custom_call.1} parent=1 // pred_check
      _
    $region15: #{tpu_custom_call.1} parent=1 // pred_check_branch
      %61 = sbr.rel (0) target = $region17
    $region16: #{tpu_custom_call.1} parent=1 // pred_region
      _
    $region17: #{tpu_custom_call.1} parent=1 // pred_fallthru
      _
    // Predicated region
    $region18: #{tpu_custom_call.1} parent=1 // pred_check
      _
    $region19: #{tpu_custom_call.1} parent=1 // pred_check_branch
      %63 = sbr.rel (0) target = $region21
    $region20: #{tpu_custom_call.1} parent=1 // pred_region
      %s65 = ssub.s32 1024, 1024
      %66 = vsyncadd [#allocation9], %s65
      %s67 = sshll.u32 [#allocation8], 4
      %s68 = int_to_ptr.vmem [resolvable:$true] %s67
      %73 = dma.hbm_to_vmem [thread:$0]  %s4, 1024, %s68, [#allocation9], 64, 64, 4
    $region21: #{tpu_custom_call.1} parent=1 // pred_fallthru
      _
    // Predicated region
    $region22: #{tpu_custom_call.1} parent=1 // pred_check
      _
    $region23: #{tpu_custom_call.1} parent=1 // pred_check_branch
      %75 = sbr.rel (0) target = $region25
    $region24: #{tpu_custom_call.1} parent=1 // pred_region
      %s77 = ssub.s32 1024, 1024
      %78 = vsyncadd [#allocation9], %s77
      %s79 = sshll.u32 [#allocation10], 4
      %s80 = int_to_ptr.vmem [resolvable:$true] %s79
      %85 = dma.hbm_to_vmem [thread:$0]  %s5, 1024, %s80, [#allocation9], 64, 64, 4
    $region25: #{tpu_custom_call.1} parent=1 // pred_fallthru
      _
    // Predicated region
    $region26: #{tpu_custom_call.1} parent=1 // pred_check
      _
    $region27: #{tpu_custom_call.1} parent=1 // pred_check_branch
      %87 = sbr.rel (0) target = $region29
    $region28: #{tpu_custom_call.1} parent=1 // pred_region
      %s89 = ssub.s32 1024, 1024
      %90 = vsyncadd [#allocation12], %s89
      %s91 = sshll.u32 [#allocation11], 4
      %s92 = int_to_ptr.vmem [resolvable:$true] %s91
      %97 = dma.hbm_to_vmem [thread:$0]  %s6, 1024, %s92, [#allocation12], 64, 64, 4
    $region29: #{tpu_custom_call.1} parent=1 // pred_fallthru
      _
    // Predicated region
    $region30: #{tpu_custom_call.1} parent=1 // pred_check
      _
    $region31: #{tpu_custom_call.1} parent=1 // pred_check_branch
      %99 = sbr.rel (0) target = $region33
    $region32: #{tpu_custom_call.1} parent=1 // pred_region
      %s101 = ssub.s32 1024, 1024
      %102 = vsyncadd [#allocation12], %s101
      %s103 = sshll.u32 [#allocation13], 4
      %s104 = int_to_ptr.vmem [resolvable:$true] %s103
      %109 = dma.hbm_to_vmem [thread:$0]  %s7, 1024, %s104, [#allocation12], 64, 64, 4
    $region33: #{tpu_custom_call.1} parent=1 // pred_fallthru
      _
    // Predicated region
    $region34: #{tpu_custom_call.1} parent=1 // pred_check
      _
    $region35: #{tpu_custom_call.1} parent=1 // pred_check_branch
      %111 = sbr.rel (0) target = $region37
    $region36: #{tpu_custom_call.1} parent=1 // pred_region
      %s113 = ssub.s32 1024, 1024
      %114 = vsyncadd [#allocation15], %s113
      %s115 = sshll.u32 [#allocation14], 4
      %s116 = int_to_ptr.vmem [resolvable:$true] %s115
      %121 = dma.hbm_to_vmem [thread:$0]  %s8, 1024, %s116, [#allocation15], 64, 64, 4
    $region37: #{tpu_custom_call.1} parent=1 // pred_fallthru
      _
    // Predicated region
    $region38: #{tpu_custom_call.1} parent=1 // pred_check
      _
    $region39: #{tpu_custom_call.1} parent=1 // pred_check_branch
      %123 = sbr.rel (0) target = $region41
    $region40: #{tpu_custom_call.1} parent=1 // pred_region
      _
    $region41: #{tpu_custom_call.1} parent=1 // pred_fallthru
      _
    // Predicated region
    $region42: #{tpu_custom_call.1} parent=1 // pred_check
      _
    $region43: #{tpu_custom_call.1} parent=1 // pred_check_branch
      %125 = sbr.rel (0) target = $region45
    $region44: #{tpu_custom_call.1} parent=1 // pred_region
      %126 = dma.done [#allocation3], 1024
    $region45: #{tpu_custom_call.1} parent=1 // pred_fallthru
      _
    // Predicated region
    $region46: #{tpu_custom_call.1} parent=1 // pred_check
      _
    $region47: #{tpu_custom_call.1} parent=1 // pred_check_branch
      %128 = sbr.rel (0) target = $region49
    $region48: #{tpu_custom_call.1} parent=1 // pred_region
      %129 = dma.done [#allocation6], 1024
    $region49: #{tpu_custom_call.1} parent=1 // pred_fallthru
      _
    // Predicated region
    $region50: #{tpu_custom_call.1} parent=1 // pred_check
      _
    $region51: #{tpu_custom_call.1} parent=1 // pred_check_branch
      %131 = sbr.rel (0) target = $region53
    $region52: #{tpu_custom_call.1} parent=1 // pred_region
      %132 = dma.done [#allocation6], 1024
    $region53: #{tpu_custom_call.1} parent=1 // pred_fallthru
      _
    // Predicated region
    $region54: #{tpu_custom_call.1} parent=1 // pred_check
      _
    $region55: #{tpu_custom_call.1} parent=1 // pred_check_branch
      %134 = sbr.rel (0) target = $region57
    $region56: #{tpu_custom_call.1} parent=1 // pred_region
      %135 = dma.done [#allocation9], 1024
    $region57: #{tpu_custom_call.1} parent=1 // pred_fallthru
      _
    // Predicated region
    $region58: #{tpu_custom_call.1} parent=1 // pred_check
      _
    $region59: #{tpu_custom_call.1} parent=1 // pred_check_branch
      %137 = sbr.rel (0) target = $region61
    $region60: #{tpu_custom_call.1} parent=1 // pred_region
      %138 = dma.done [#allocation9], 1024
    $region61: #{tpu_custom_call.1} parent=1 // pred_fallthru
      _
    // Predicated region
    $region62: #{tpu_custom_call.1} parent=1 // pred_check
      _
    $region63: #{tpu_custom_call.1} parent=1 // pred_check_branch
      %140 = sbr.rel (0) target = $region65
    $region64: #{tpu_custom_call.1} parent=1 // pred_region
      %141 = dma.done [#allocation12], 1024
    $region65: #{tpu_custom_call.1} parent=1 // pred_fallthru
      _
    // Predicated region
    $region66: #{tpu_custom_call.1} parent=1 // pred_check
      _
    $region67: #{tpu_custom_call.1} parent=1 // pred_check_branch
      %143 = sbr.rel (0) target = $region69
    $region68: #{tpu_custom_call.1} parent=1 // pred_region
      %144 = dma.done [#allocation12], 1024
    $region69: #{tpu_custom_call.1} parent=1 // pred_fallthru
      _
    // Predicated region
    $region70: #{tpu_custom_call.1} parent=1 // pred_check
      _
    $region71: #{tpu_custom_call.1} parent=1 // pred_check_branch
      %146 = sbr.rel (0) target = $region73
    $region72: #{tpu_custom_call.1} parent=1 // pred_region
      %147 = dma.done [#allocation15], 1024
    $region73: #{tpu_custom_call.1} parent=1 // pred_fallthru
      _
    %v149 = vld [vmem:[#allocation5] sm:$0xf]
    %v150 = vld [vmem:[#allocation5 + $0x4] sm:$0xf]
    %v151 = vld [vmem:[#allocation5 + $0x8] sm:$0xf]
    %v152 = vld [vmem:[#allocation5 + $0xc] sm:$0xf]
    %v153 = vld [vmem:[#allocation5 + $0x10] sm:$0xf]
    %v154 = vld [vmem:[#allocation5 + $0x14] sm:$0xf]
    %v155 = vld [vmem:[#allocation5 + $0x18] sm:$0xf]
    %v156 = vld [vmem:[#allocation5 + $0x1c] sm:$0xf]
    %v157 = vld [vmem:[#allocation5 + $0x20] sm:$0xf]
    %v158 = vld [vmem:[#allocation5 + $0x24] sm:$0xf]
    %v159 = vld [vmem:[#allocation5 + $0x28] sm:$0xf]
    %v160 = vld [vmem:[#allocation5 + $0x2c] sm:$0xf]
    %v161 = vld [vmem:[#allocation5 + $0x30] sm:$0xf]
    %v162 = vld [vmem:[#allocation5 + $0x34] sm:$0xf]
    %v163 = vld [vmem:[#allocation5 + $0x38] sm:$0xf]
    %v164 = vld [vmem:[#allocation5 + $0x3c] sm:$0xf]
    %v165 = vld [vmem:[#allocation7] sm:$0xf]
    %v166 = vld [vmem:[#allocation7 + $0x4] sm:$0xf]
    %v167 = vld [vmem:[#allocation7 + $0x8] sm:$0xf]
    %v168 = vld [vmem:[#allocation7 + $0xc] sm:$0xf]
    %v169 = vld [vmem:[#allocation7 + $0x10] sm:$0xf]
    %v170 = vld [vmem:[#allocation7 + $0x14] sm:$0xf]
    %v171 = vld [vmem:[#allocation7 + $0x18] sm:$0xf]
    %v172 = vld [vmem:[#allocation7 + $0x1c] sm:$0xf]
    %v173 = vld [vmem:[#allocation7 + $0x20] sm:$0xf]
    %v174 = vld [vmem:[#allocation7 + $0x24] sm:$0xf]
    %v175 = vld [vmem:[#allocation7 + $0x28] sm:$0xf]
    %v176 = vld [vmem:[#allocation7 + $0x2c] sm:$0xf]
    %v177 = vld [vmem:[#allocation7 + $0x30] sm:$0xf]
    %v178 = vld [vmem:[#allocation7 + $0x34] sm:$0xf]
    %v179 = vld [vmem:[#allocation7 + $0x38] sm:$0xf]
    %v180 = vld [vmem:[#allocation7 + $0x3c] sm:$0xf]
    %v197 = vunpack.c.l.b16 %v149
    %v198 = vunpack.c.l.b16 %v150
    %v199 = vunpack.c.l.b16 %v151
    %v200 = vunpack.c.l.b16 %v152
    %v201 = vunpack.c.l.b16 %v153
    %v202 = vunpack.c.l.b16 %v154
    %v203 = vunpack.c.l.b16 %v155
    %v204 = vunpack.c.l.b16 %v156
    %v205 = vunpack.c.l.b16 %v157
    %v206 = vunpack.c.l.b16 %v158
    %v207 = vunpack.c.l.b16 %v159
    %v208 = vunpack.c.l.b16 %v160
    %v209 = vunpack.c.l.b16 %v161
    %v210 = vunpack.c.l.b16 %v162
    %v211 = vunpack.c.l.b16 %v163
    %v212 = vunpack.c.l.b16 %v164
    %v213 = vpack.c.b16 %v198, %v197
    %v214 = vpack.c.b16 %v200, %v199
    %v215 = vpack.c.b16 %v202, %v201
    %v216 = vpack.c.b16 %v204, %v203
    %v217 = vpack.c.b16 %v206, %v205
    %v218 = vpack.c.b16 %v208, %v207
    %v219 = vpack.c.b16 %v210, %v209
    %v220 = vpack.c.b16 %v212, %v211
    %v245 = vunpack.c.l.b16 %v165
    %v246 = vunpack.c.l.b16 %v166
    %v247 = vunpack.c.l.b16 %v167
    %v248 = vunpack.c.l.b16 %v168
    %v249 = vunpack.c.l.b16 %v169
    %v250 = vunpack.c.l.b16 %v170
    %v251 = vunpack.c.l.b16 %v171
    %v252 = vunpack.c.l.b16 %v172
    %v253 = vunpack.c.l.b16 %v173
    %v254 = vunpack.c.l.b16 %v174
    %v255 = vunpack.c.l.b16 %v175
    %v256 = vunpack.c.l.b16 %v176
    %v257 = vunpack.c.l.b16 %v177
    %v258 = vunpack.c.l.b16 %v178
    %v259 = vunpack.c.l.b16 %v179
    %v260 = vunpack.c.l.b16 %v180
    %v261 = vpack.c.b16 %v246, %v245
    %v262 = vpack.c.b16 %v248, %v247
    %v263 = vpack.c.b16 %v250, %v249
    %v264 = vpack.c.b16 %v252, %v251
    %v265 = vpack.c.b16 %v254, %v253
    %v266 = vpack.c.b16 %v256, %v255
    %v267 = vpack.c.b16 %v258, %v257
    %v268 = vpack.c.b16 %v260, %v259
    %277 = vmatprep.subr.bf16.mxu0 0
    %278 = vmatpush1.bf16.msra.mxu0 %v261
    %279 = vmatprep.subr.bf16.mxu0 0
    %280 = vmatpush1.bf16.msra.mxu0 %v262
    %281 = vmatprep.subr.bf16.mxu0 0
    %282 = vmatpush1.bf16.msra.mxu0 %v263
    %283 = vmatprep.subr.bf16.mxu0 0
    %284 = vmatpush1.bf16.msra.mxu0 %v264
    %285 = vmatprep.subr.bf16.mxu0 0
    %286 = vmatpush1.bf16.msra.mxu0 %v265
    %287 = vmatprep.subr.bf16.mxu0 0
    %288 = vmatpush1.bf16.msra.mxu0 %v266
    %289 = vmatprep.subr.bf16.mxu0 0
    %290 = vmatpush1.bf16.msra.mxu0 %v267
    %291 = vmatprep.subr.bf16.mxu0 0
    %292 = vmatpush1.bf16.msra.mxu0 %v268
    %293 = vmatprep.subr.bf16.mxu0 0
    %294 = vmatpush1.bf16.msra.mxu0 0
    %295 = vmatprep.subr.bf16.mxu0 0
    %296 = vmatpush1.bf16.msra.mxu0 0
    %297 = vmatprep.subr.bf16.mxu0 0
    %298 = vmatpush1.bf16.msra.mxu0 0
    %299 = vmatprep.subr.bf16.mxu0 0
    %300 = vmatpush1.bf16.msra.mxu0 0
    %301 = vmatprep.subr.bf16.mxu0 0
    %302 = vmatpush1.bf16.msra.mxu0 0
    %303 = vmatprep.subr.bf16.mxu0 0
    %304 = vmatpush1.bf16.msra.mxu0 0
    %305 = vmatprep.subr.bf16.mxu0 0
    %306 = vmatpush1.bf16.msra.mxu0 0
    %307 = vmatprep.subr.bf16.mxu0 0
    %308 = vmatpush1.bf16.msra.mxu0 0
    %309 = vmatprep.mubr.bf16.mxu0 0
    %310 = vmatmul.mubr.bf16.gmra.mrb[0].mxu0 %v213
    %v311 = vpop.f32.mrb[0].mxu0
    %v312 = vadd.f32 0.0, %v311
    %v313 = vpop.f32.mrb[0].mxu0
    %v314 = vpop.f32.mrb[0].mxu0
    %v315 = vadd.f32 0.0, %v314
    %v316 = vpop.f32.mrb[0].mxu0
    %317 = vmatprep.mubr.bf16.mxu0 0
    %318 = vmatmul.mubr.bf16.gmra.mrb[0].mxu0 %v214
    %v319 = vpop.f32.mrb[0].mxu0
    %v320 = vadd.f32 0.0, %v319
    %v321 = vpop.f32.mrb[0].mxu0
    %v322 = vpop.f32.mrb[0].mxu0
    %v323 = vadd.f32 0.0, %v322
    %v324 = vpop.f32.mrb[0].mxu0
    %325 = vmatprep.mubr.bf16.mxu0 0
    %326 = vmatmul.mubr.bf16.gmra.mrb[0].mxu0 %v215
    %v327 = vpop.f32.mrb[0].mxu0
    %v328 = vadd.f32 0.0, %v327
    %v329 = vpop.f32.mrb[0].mxu0
    %v330 = vpop.f32.mrb[0].mxu0
    %v331 = vadd.f32 0.0, %v330
    %v332 = vpop.f32.mrb[0].mxu0
    %333 = vmatprep.mubr.bf16.mxu0 0
    %334 = vmatmul.mubr.bf16.gmra.mrb[0].mxu0 %v216
    %v335 = vpop.f32.mrb[0].mxu0
    %v336 = vadd.f32 0.0, %v335
    %v337 = vpop.f32.mrb[0].mxu0
    %v338 = vpop.f32.mrb[0].mxu0
    %v339 = vadd.f32 0.0, %v338
    %v340 = vpop.f32.mrb[0].mxu0
    %341 = vmatprep.mubr.bf16.mxu0 0
    %342 = vmatmul.mubr.bf16.gmra.mrb[0].mxu0 %v217
    %v343 = vpop.f32.mrb[0].mxu0
    %v344 = vadd.f32 0.0, %v343
    %v345 = vpop.f32.mrb[0].mxu0
    %v346 = vpop.f32.mrb[0].mxu0
    %v347 = vadd.f32 0.0, %v346
    %v348 = vpop.f32.mrb[0].mxu0
    %349 = vmatprep.mubr.bf16.mxu0 0
    %350 = vmatmul.mubr.bf16.gmra.mrb[0].mxu0 %v218
    %v351 = vpop.f32.mrb[0].mxu0
    %v352 = vadd.f32 0.0, %v351
    %v353 = vpop.f32.mrb[0].mxu0
    %v354 = vpop.f32.mrb[0].mxu0
    %v355 = vadd.f32 0.0, %v354
    %v356 = vpop.f32.mrb[0].mxu0
    %357 = vmatprep.mubr.bf16.mxu0 0
    %358 = vmatmul.mubr.bf16.gmra.mrb[0].mxu0 %v219
    %v359 = vpop.f32.mrb[0].mxu0
    %v360 = vadd.f32 0.0, %v359
    %v361 = vpop.f32.mrb[0].mxu0
    %v362 = vpop.f32.mrb[0].mxu0
    %v363 = vadd.f32 0.0, %v362
    %v364 = vpop.f32.mrb[0].mxu0
    %365 = vmatprep.mubr.bf16.mxu0 0
    %366 = vmatmul.mubr.bf16.gmra.mrb[0].mxu0 %v220
    %v367 = vpop.f32.mrb[0].mxu0
    %v368 = vadd.f32 0.0, %v367
    %v369 = vpop.f32.mrb[0].mxu0
    %v370 = vpop.f32.mrb[0].mxu0
    %v371 = vadd.f32 0.0, %v370
    %v372 = vpop.f32.mrb[0].mxu0
    %373 = vdwg.mxu0
    %v374 = vld [vmem:[#allocation2] sm:$0xf]
    %v375 = vld [vmem:[#allocation2 + $0x4] sm:$0xf]
    %v376 = vld [vmem:[#allocation2 + $0x8] sm:$0xf]
    %v377 = vld [vmem:[#allocation2 + $0xc] sm:$0xf]
    %v378 = vld [vmem:[#allocation2 + $0x10] sm:$0xf]
    %v379 = vld [vmem:[#allocation2 + $0x14] sm:$0xf]
    %v380 = vld [vmem:[#allocation2 + $0x18] sm:$0xf]
    %v381 = vld [vmem:[#allocation2 + $0x1c] sm:$0xf]
    %v382 = vld [vmem:[#allocation2 + $0x20] sm:$0xf]
    %v383 = vld [vmem:[#allocation2 + $0x24] sm:$0xf]
    %v384 = vld [vmem:[#allocation2 + $0x28] sm:$0xf]
    %v385 = vld [vmem:[#allocation2 + $0x2c] sm:$0xf]
    %v386 = vld [vmem:[#allocation2 + $0x30] sm:$0xf]
    %v387 = vld [vmem:[#allocation2 + $0x34] sm:$0xf]
    %v388 = vld [vmem:[#allocation2 + $0x38] sm:$0xf]
    %v389 = vld [vmem:[#allocation2 + $0x3c] sm:$0xf]
    %v390 = vpack.c.bf16 %v315, %v312
    %v391 = vpack.c.bf16 %v323, %v320
    %v392 = vpack.c.bf16 %v331, %v328
    %v393 = vpack.c.bf16 %v339, %v336
    %v394 = vpack.c.bf16 %v347, %v344
    %v395 = vpack.c.bf16 %v355, %v352
    %v396 = vpack.c.bf16 %v363, %v360
    %v397 = vpack.c.bf16 %v371, %v368
    %v398 = vld [vmem:[%s3] sm:$0x1]
    %v400 = vlaneseq
    %v401 = vshrl.u32 %v400, 7
    %v402 = vsub.s32 0, %v401
    %v403 = vrot.slane %v398, %v402
    %v421 = vunpack.c.l.b16 %v374
    %v422 = vunpack.c.l.b16 %v375
    %v423 = vunpack.c.l.b16 %v376
    %v424 = vunpack.c.l.b16 %v377
    %v425 = vunpack.c.l.b16 %v378
    %v426 = vunpack.c.l.b16 %v379
    %v427 = vunpack.c.l.b16 %v380
    %v428 = vunpack.c.l.b16 %v381
    %v429 = vunpack.c.l.b16 %v382
    %v430 = vunpack.c.l.b16 %v383
    %v431 = vunpack.c.l.b16 %v384
    %v432 = vunpack.c.l.b16 %v385
    %v433 = vunpack.c.l.b16 %v386
    %v434 = vunpack.c.l.b16 %v387
    %v435 = vunpack.c.l.b16 %v388
    %v436 = vunpack.c.l.b16 %v389
    %v437 = vpack.c.b16 %v422, %v421
    %v438 = vpack.c.b16 %v424, %v423
    %v439 = vpack.c.b16 %v426, %v425
    %v440 = vpack.c.b16 %v428, %v427
    %v441 = vpack.c.b16 %v430, %v429
    %v442 = vpack.c.b16 %v432, %v431
    %v443 = vpack.c.b16 %v434, %v433
    %v444 = vpack.c.b16 %v436, %v435
    %453 = vmatprep.subr.bf16.mxu0 0
    %454 = vmatpush1.bf16.msra.mxu0 %v390
    %455 = vmatprep.subr.bf16.mxu0 0
    %456 = vmatpush1.bf16.msra.mxu0 %v391
    %457 = vmatprep.subr.bf16.mxu0 0
    %458 = vmatpush1.bf16.msra.mxu0 %v392
    %459 = vmatprep.subr.bf16.mxu0 0
    %460 = vmatpush1.bf16.msra.mxu0 %v393
    %461 = vmatprep.subr.bf16.mxu0 0
    %462 = vmatpush1.bf16.msra.mxu0 %v394
    %463 = vmatprep.subr.bf16.mxu0 0
    %464 = vmatpush1.bf16.msra.mxu0 %v395
    %465 = vmatprep.subr.bf16.mxu0 0
    %466 = vmatpush1.bf16.msra.mxu0 %v396
    %467 = vmatprep.subr.bf16.mxu0 0
    %468 = vmatpush1.bf16.msra.mxu0 %v397
    %469 = vmatprep.subr.bf16.mxu0 0
    %470 = vmatpush1.bf16.msra.mxu0 0
    %471 = vmatprep.subr.bf16.mxu0 0
    %472 = vmatpush1.bf16.msra.mxu0 0
    %473 = vmatprep.subr.bf16.mxu0 0
    %474 = vmatpush1.bf16.msra.mxu0 0
    %475 = vmatprep.subr.bf16.mxu0 0
    %476 = vmatpush1.bf16.msra.mxu0 0
    %477 = vmatprep.subr.bf16.mxu0 0
    %478 = vmatpush1.bf16.msra.mxu0 0
    %479 = vmatprep.subr.bf16.mxu0 0
    %480 = vmatpush1.bf16.msra.mxu0 0
    %481 = vmatprep.subr.bf16.mxu0 0
    %482 = vmatpush1.bf16.msra.mxu0 0
    %483 = vmatprep.subr.bf16.mxu0 0
    %484 = vmatpush1.bf16.msra.mxu0 0
    %485 = vmatprep.mubr.bf16.mxu0 0
    %486 = vmatmul.mubr.bf16.gmra.mrb[0].mxu0 %v437
    %v487 = vpop.f32.mrb[0].mxu0
    %v488 = vadd.f32 %v403, %v487
    %v489 = vpop.f32.mrb[0].mxu0
    %v490 = vpop.f32.mrb[0].mxu0
    %v491 = vadd.f32 %v403, %v490
    %v492 = vpop.f32.mrb[0].mxu0
    %493 = vmatprep.mubr.bf16.mxu0 0
    %494 = vmatmul.mubr.bf16.gmra.mrb[0].mxu0 %v438
    %v495 = vpop.f32.mrb[0].mxu0
    %v496 = vadd.f32 %v403, %v495
    %v497 = vpop.f32.mrb[0].mxu0
    %v498 = vpop.f32.mrb[0].mxu0
    %v499 = vadd.f32 %v403, %v498
    %v500 = vpop.f32.mrb[0].mxu0
    %501 = vmatprep.mubr.bf16.mxu0 0
    %502 = vmatmul.mubr.bf16.gmra.mrb[0].mxu0 %v439
    %v503 = vpop.f32.mrb[0].mxu0
    %v504 = vadd.f32 %v403, %v503
    %v505 = vpop.f32.mrb[0].mxu0
    %v506 = vpop.f32.mrb[0].mxu0
    %v507 = vadd.f32 %v403, %v506
    %v508 = vpop.f32.mrb[0].mxu0
    %509 = vmatprep.mubr.bf16.mxu0 0
    %510 = vmatmul.mubr.bf16.gmra.mrb[0].mxu0 %v440
    %v511 = vpop.f32.mrb[0].mxu0
    %v512 = vadd.f32 %v403, %v511
    %v513 = vpop.f32.mrb[0].mxu0
    %v514 = vpop.f32.mrb[0].mxu0
    %v515 = vadd.f32 %v403, %v514
    %v516 = vpop.f32.mrb[0].mxu0
    %517 = vmatprep.mubr.bf16.mxu0 0
    %518 = vmatmul.mubr.bf16.gmra.mrb[0].mxu0 %v441
    %v519 = vpop.f32.mrb[0].mxu0
    %v520 = vadd.f32 %v403, %v519
    %v521 = vpop.f32.mrb[0].mxu0
    %v522 = vpop.f32.mrb[0].mxu0
    %v523 = vadd.f32 %v403, %v522
    %v524 = vpop.f32.mrb[0].mxu0
    %525 = vmatprep.mubr.bf16.mxu0 0
    %526 = vmatmul.mubr.bf16.gmra.mrb[0].mxu0 %v442
    %v527 = vpop.f32.mrb[0].mxu0
    %v528 = vadd.f32 %v403, %v527
    %v529 = vpop.f32.mrb[0].mxu0
    %v530 = vpop.f32.mrb[0].mxu0
    %v531 = vadd.f32 %v403, %v530
    %v532 = vpop.f32.mrb[0].mxu0
    %533 = vmatprep.mubr.bf16.mxu0 0
    %534 = vmatmul.mubr.bf16.gmra.mrb[0].mxu0 %v443
    %v535 = vpop.f32.mrb[0].mxu0
    %v536 = vadd.f32 %v403, %v535
    %v537 = vpop.f32.mrb[0].mxu0
    %v538 = vpop.f32.mrb[0].mxu0
    %v539 = vadd.f32 %v403, %v538
    %v540 = vpop.f32.mrb[0].mxu0
    %541 = vmatprep.mubr.bf16.mxu0 0
    %542 = vmatmul.mubr.bf16.gmra.mrb[0].mxu0 %v444
    %v543 = vpop.f32.mrb[0].mxu0
    %v544 = vadd.f32 %v403, %v543
    %v545 = vpop.f32.mrb[0].mxu0
    %v546 = vpop.f32.mrb[0].mxu0
    %v547 = vadd.f32 %v403, %v546
    %v548 = vpop.f32.mrb[0].mxu0
    %549 = vdwg.mxu0
    %v550 = vmax.f32 %v488, 0.0
    %v551 = vmax.f32 %v491, 0.0
    %v552 = vmax.f32 %v496, 0.0
    %v553 = vmax.f32 %v499, 0.0
    %v554 = vmax.f32 %v504, 0.0
    %v555 = vmax.f32 %v507, 0.0
    %v556 = vmax.f32 %v512, 0.0
    %v557 = vmax.f32 %v515, 0.0
    %v558 = vmax.f32 %v520, 0.0
    %v559 = vmax.f32 %v523, 0.0
    %v560 = vmax.f32 %v528, 0.0
    %v561 = vmax.f32 %v531, 0.0
    %v562 = vmax.f32 %v536, 0.0
    %v563 = vmax.f32 %v539, 0.0
    %v564 = vmax.f32 %v544, 0.0
    %v565 = vmax.f32 %v547, 0.0
    %v566 = vld [vmem:[#allocation8] sm:$0xf]
    %v567 = vld [vmem:[#allocation8 + $0x4] sm:$0xf]
    %v568 = vld [vmem:[#allocation8 + $0x8] sm:$0xf]
    %v569 = vld [vmem:[#allocation8 + $0xc] sm:$0xf]
    %v570 = vld [vmem:[#allocation8 + $0x10] sm:$0xf]
    %v571 = vld [vmem:[#allocation8 + $0x14] sm:$0xf]
    %v572 = vld [vmem:[#allocation8 + $0x18] sm:$0xf]
    %v573 = vld [vmem:[#allocation8 + $0x1c] sm:$0xf]
    %v574 = vld [vmem:[#allocation8 + $0x20] sm:$0xf]
    %v575 = vld [vmem:[#allocation8 + $0x24] sm:$0xf]
    %v576 = vld [vmem:[#allocation8 + $0x28] sm:$0xf]
    %v577 = vld [vmem:[#allocation8 + $0x2c] sm:$0xf]
    %v578 = vld [vmem:[#allocation8 + $0x30] sm:$0xf]
    %v579 = vld [vmem:[#allocation8 + $0x34] sm:$0xf]
    %v580 = vld [vmem:[#allocation8 + $0x38] sm:$0xf]
    %v581 = vld [vmem:[#allocation8 + $0x3c] sm:$0xf]
    %v582 = vpack.c.bf16 %v551, %v550
    %v583 = vpack.c.bf16 %v553, %v552
    %v584 = vpack.c.bf16 %v555, %v554
    %v585 = vpack.c.bf16 %v557, %v556
    %v586 = vpack.c.bf16 %v559, %v558
    %v587 = vpack.c.bf16 %v561, %v560
    %v588 = vpack.c.bf16 %v563, %v562
    %v589 = vpack.c.bf16 %v565, %v564
    %v606 = vunpack.c.l.b16 %v566
    %v607 = vunpack.c.l.b16 %v567
    %v608 = vunpack.c.l.b16 %v568
    %v609 = vunpack.c.l.b16 %v569
    %v610 = vunpack.c.l.b16 %v570
    %v611 = vunpack.c.l.b16 %v571
    %v612 = vunpack.c.l.b16 %v572
    %v613 = vunpack.c.l.b16 %v573
    %v614 = vunpack.c.l.b16 %v574
    %v615 = vunpack.c.l.b16 %v575
    %v616 = vunpack.c.l.b16 %v576
    %v617 = vunpack.c.l.b16 %v577
    %v618 = vunpack.c.l.b16 %v578
    %v619 = vunpack.c.l.b16 %v579
    %v620 = vunpack.c.l.b16 %v580
    %v621 = vunpack.c.l.b16 %v581
    %v622 = vpack.c.b16 %v607, %v606
    %v623 = vpack.c.b16 %v609, %v608
    %v624 = vpack.c.b16 %v611, %v610
    %v625 = vpack.c.b16 %v613, %v612
    %v626 = vpack.c.b16 %v615, %v614
    %v627 = vpack.c.b16 %v617, %v616
    %v628 = vpack.c.b16 %v619, %v618
    %v629 = vpack.c.b16 %v621, %v620
    %638 = vmatprep.subr.bf16.mxu0 0
    %639 = vmatpush1.bf16.msra.mxu0 %v582
    %640 = vmatprep.subr.bf16.mxu0 0
    %641 = vmatpush1.bf16.msra.mxu0 %v583
    %642 = vmatprep.subr.bf16.mxu0 0
    %643 = vmatpush1.bf16.msra.mxu0 %v584
    %644 = vmatprep.subr.bf16.mxu0 0
    %645 = vmatpush1.bf16.msra.mxu0 %v585
    %646 = vmatprep.subr.bf16.mxu0 0
    %647 = vmatpush1.bf16.msra.mxu0 %v586
    %648 = vmatprep.subr.bf16.mxu0 0
    %649 = vmatpush1.bf16.msra.mxu0 %v587
    %650 = vmatprep.subr.bf16.mxu0 0
    %651 = vmatpush1.bf16.msra.mxu0 %v588
    %652 = vmatprep.subr.bf16.mxu0 0
    %653 = vmatpush1.bf16.msra.mxu0 %v589
    %654 = vmatprep.subr.bf16.mxu0 0
    %655 = vmatpush1.bf16.msra.mxu0 0
    %656 = vmatprep.subr.bf16.mxu0 0
    %657 = vmatpush1.bf16.msra.mxu0 0
    %658 = vmatprep.subr.bf16.mxu0 0
    %659 = vmatpush1.bf16.msra.mxu0 0
    %660 = vmatprep.subr.bf16.mxu0 0
    %661 = vmatpush1.bf16.msra.mxu0 0
    %662 = vmatprep.subr.bf16.mxu0 0
    %663 = vmatpush1.bf16.msra.mxu0 0
    %664 = vmatprep.subr.bf16.mxu0 0
    %665 = vmatpush1.bf16.msra.mxu0 0
    %666 = vmatprep.subr.bf16.mxu0 0
    %667 = vmatpush1.bf16.msra.mxu0 0
    %668 = vmatprep.subr.bf16.mxu0 0
    %669 = vmatpush1.bf16.msra.mxu0 0
    %670 = vmatprep.mubr.bf16.mxu0 0
    %671 = vmatmul.mubr.bf16.gmra.mrb[0].mxu0 %v622
    %v672 = vpop.f32.mrb[0].mxu0
    %v673 = vadd.f32 0.0, %v672
    %v674 = vpop.f32.mrb[0].mxu0
    %v675 = vpop.f32.mrb[0].mxu0
    %v676 = vadd.f32 0.0, %v675
    %v677 = vpop.f32.mrb[0].mxu0
    %678 = vmatprep.mubr.bf16.mxu0 0
    %679 = vmatmul.mubr.bf16.gmra.mrb[0].mxu0 %v623
    %v680 = vpop.f32.mrb[0].mxu0
    %v681 = vadd.f32 0.0, %v680
    %v682 = vpop.f32.mrb[0].mxu0
    %v683 = vpop.f32.mrb[0].mxu0
    %v684 = vadd.f32 0.0, %v683
    %v685 = vpop.f32.mrb[0].mxu0
    %686 = vmatprep.mubr.bf16.mxu0 0
    %687 = vmatmul.mubr.bf16.gmra.mrb[0].mxu0 %v624
    %v688 = vpop.f32.mrb[0].mxu0
    %v689 = vadd.f32 0.0, %v688
    %v690 = vpop.f32.mrb[0].mxu0
    %v691 = vpop.f32.mrb[0].mxu0
    %v692 = vadd.f32 0.0, %v691
    %v693 = vpop.f32.mrb[0].mxu0
    %694 = vmatprep.mubr.bf16.mxu0 0
    %695 = vmatmul.mubr.bf16.gmra.mrb[0].mxu0 %v625
    %v696 = vpop.f32.mrb[0].mxu0
    %v697 = vadd.f32 0.0, %v696
    %v698 = vpop.f32.mrb[0].mxu0
    %v699 = vpop.f32.mrb[0].mxu0
    %v700 = vadd.f32 0.0, %v699
    %v701 = vpop.f32.mrb[0].mxu0
    %702 = vmatprep.mubr.bf16.mxu0 0
    %703 = vmatmul.mubr.bf16.gmra.mrb[0].mxu0 %v626
    %v704 = vpop.f32.mrb[0].mxu0
    %v705 = vadd.f32 0.0, %v704
    %v706 = vpop.f32.mrb[0].mxu0
    %v707 = vpop.f32.mrb[0].mxu0
    %v708 = vadd.f32 0.0, %v707
    %v709 = vpop.f32.mrb[0].mxu0
    %710 = vmatprep.mubr.bf16.mxu0 0
    %711 = vmatmul.mubr.bf16.gmra.mrb[0].mxu0 %v627
    %v712 = vpop.f32.mrb[0].mxu0
    %v713 = vadd.f32 0.0, %v712
    %v714 = vpop.f32.mrb[0].mxu0
    %v715 = vpop.f32.mrb[0].mxu0
    %v716 = vadd.f32 0.0, %v715
    %v717 = vpop.f32.mrb[0].mxu0
    %718 = vmatprep.mubr.bf16.mxu0 0
    %719 = vmatmul.mubr.bf16.gmra.mrb[0].mxu0 %v628
    %v720 = vpop.f32.mrb[0].mxu0
    %v721 = vadd.f32 0.0, %v720
    %v722 = vpop.f32.mrb[0].mxu0
    %v723 = vpop.f32.mrb[0].mxu0
    %v724 = vadd.f32 0.0, %v723
    %v725 = vpop.f32.mrb[0].mxu0
    %726 = vmatprep.mubr.bf16.mxu0 0
    %727 = vmatmul.mubr.bf16.gmra.mrb[0].mxu0 %v629
    %v728 = vpop.f32.mrb[0].mxu0
    %v729 = vadd.f32 0.0, %v728
    %v730 = vpop.f32.mrb[0].mxu0
    %v731 = vpop.f32.mrb[0].mxu0
    %v732 = vadd.f32 0.0, %v731
    %v733 = vpop.f32.mrb[0].mxu0
    %734 = vdwg.mxu0
    %735 = vst [vmem:[#allocation17] sm:$0xff] %v673
    %736 = vst [vmem:[#allocation17 + $0x8] sm:$0xff] %v676
    %737 = vst [vmem:[#allocation17 + $0x10] sm:$0xff] %v681
    %738 = vst [vmem:[#allocation17 + $0x18] sm:$0xff] %v684
    %739 = vst [vmem:[#allocation17 + $0x20] sm:$0xff] %v689
    %740 = vst [vmem:[#allocation17 + $0x28] sm:$0xff] %v692
    %741 = vst [vmem:[#allocation17 + $0x30] sm:$0xff] %v697
    %742 = vst [vmem:[#allocation17 + $0x38] sm:$0xff] %v700
    %743 = vst [vmem:[#allocation17 + $0x40] sm:$0xff] %v705
    %744 = vst [vmem:[#allocation17 + $0x48] sm:$0xff] %v708
    %745 = vst [vmem:[#allocation17 + $0x50] sm:$0xff] %v713
    %746 = vst [vmem:[#allocation17 + $0x58] sm:$0xff] %v716
    %747 = vst [vmem:[#allocation17 + $0x60] sm:$0xff] %v721
    %748 = vst [vmem:[#allocation17 + $0x68] sm:$0xff] %v724
    %749 = vst [vmem:[#allocation17 + $0x70] sm:$0xff] %v729
    %750 = vst [vmem:[#allocation17 + $0x78] sm:$0xff] %v732
    %v751 = vpack.c.bf16 %v676, %v673
    %v752 = vpack.c.bf16 %v684, %v681
    %v753 = vpack.c.bf16 %v692, %v689
    %v754 = vpack.c.bf16 %v700, %v697
    %v755 = vpack.c.bf16 %v708, %v705
    %v756 = vpack.c.bf16 %v716, %v713
    %v757 = vpack.c.bf16 %v724, %v721
    %v758 = vpack.c.bf16 %v732, %v729
    %v759 = vld [vmem:[#allocation10] sm:$0xf]
    %v760 = vld [vmem:[#allocation10 + $0x4] sm:$0xf]
    %v761 = vld [vmem:[#allocation10 + $0x8] sm:$0xf]
    %v762 = vld [vmem:[#allocation10 + $0xc] sm:$0xf]
    %v763 = vld [vmem:[#allocation10 + $0x10] sm:$0xf]
    %v764 = vld [vmem:[#allocation10 + $0x14] sm:$0xf]
    %v765 = vld [vmem:[#allocation10 + $0x18] sm:$0xf]
    %v766 = vld [vmem:[#allocation10 + $0x1c] sm:$0xf]
    %v767 = vld [vmem:[#allocation10 + $0x20] sm:$0xf]
    %v768 = vld [vmem:[#allocation10 + $0x24] sm:$0xf]
    %v769 = vld [vmem:[#allocation10 + $0x28] sm:$0xf]
    %v770 = vld [vmem:[#allocation10 + $0x2c] sm:$0xf]
    %v771 = vld [vmem:[#allocation10 + $0x30] sm:$0xf]
    %v772 = vld [vmem:[#allocation10 + $0x34] sm:$0xf]
    %v773 = vld [vmem:[#allocation10 + $0x38] sm:$0xf]
    %v774 = vld [vmem:[#allocation10 + $0x3c] sm:$0xf]
    %v791 = vunpack.c.l.b16 %v759
    %v792 = vunpack.c.l.b16 %v760
    %v793 = vunpack.c.l.b16 %v761
    %v794 = vunpack.c.l.b16 %v762
    %v795 = vunpack.c.l.b16 %v763
    %v796 = vunpack.c.l.b16 %v764
    %v797 = vunpack.c.l.b16 %v765
    %v798 = vunpack.c.l.b16 %v766
    %v799 = vunpack.c.l.b16 %v767
    %v800 = vunpack.c.l.b16 %v768
    %v801 = vunpack.c.l.b16 %v769
    %v802 = vunpack.c.l.b16 %v770
    %v803 = vunpack.c.l.b16 %v771
    %v804 = vunpack.c.l.b16 %v772
    %v805 = vunpack.c.l.b16 %v773
    %v806 = vunpack.c.l.b16 %v774
    %v807 = vpack.c.b16 %v792, %v791
    %v808 = vpack.c.b16 %v794, %v793
    %v809 = vpack.c.b16 %v796, %v795
    %v810 = vpack.c.b16 %v798, %v797
    %v811 = vpack.c.b16 %v800, %v799
    %v812 = vpack.c.b16 %v802, %v801
    %v813 = vpack.c.b16 %v804, %v803
    %v814 = vpack.c.b16 %v806, %v805
    %823 = vmatprep.subr.bf16.mxu0 0
    %824 = vmatpush1.bf16.msra.mxu0 %v751
    %825 = vmatprep.subr.bf16.mxu0 0
    %826 = vmatpush1.bf16.msra.mxu0 %v752
    %827 = vmatprep.subr.bf16.mxu0 0
    %828 = vmatpush1.bf16.msra.mxu0 %v753
    %829 = vmatprep.subr.bf16.mxu0 0
    %830 = vmatpush1.bf16.msra.mxu0 %v754
    %831 = vmatprep.subr.bf16.mxu0 0
    %832 = vmatpush1.bf16.msra.mxu0 %v755
    %833 = vmatprep.subr.bf16.mxu0 0
    %834 = vmatpush1.bf16.msra.mxu0 %v756
    %835 = vmatprep.subr.bf16.mxu0 0
    %836 = vmatpush1.bf16.msra.mxu0 %v757
    %837 = vmatprep.subr.bf16.mxu0 0
    %838 = vmatpush1.bf16.msra.mxu0 %v758
    %839 = vmatprep.subr.bf16.mxu0 0
    %840 = vmatpush1.bf16.msra.mxu0 0
    %841 = vmatprep.subr.bf16.mxu0 0
    %842 = vmatpush1.bf16.msra.mxu0 0
    %843 = vmatprep.subr.bf16.mxu0 0
    %844 = vmatpush1.bf16.msra.mxu0 0
    %845 = vmatprep.subr.bf16.mxu0 0
    %846 = vmatpush1.bf16.msra.mxu0 0
    %847 = vmatprep.subr.bf16.mxu0 0
    %848 = vmatpush1.bf16.msra.mxu0 0
    %849 = vmatprep.subr.bf16.mxu0 0
    %850 = vmatpush1.bf16.msra.mxu0 0
    %851 = vmatprep.subr.bf16.mxu0 0
    %852 = vmatpush1.bf16.msra.mxu0 0
    %853 = vmatprep.subr.bf16.mxu0 0
    %854 = vmatpush1.bf16.msra.mxu0 0
    %855 = vmatprep.mubr.bf16.mxu0 0
    %856 = vmatmul.mubr.bf16.gmra.mrb[0].mxu0 %v807
    %v857 = vpop.f32.mrb[0].mxu0
    %v858 = vadd.f32 0.0, %v857
    %v859 = vpop.f32.mrb[0].mxu0
    %v860 = vpop.f32.mrb[0].mxu0
    %v861 = vadd.f32 0.0, %v860
    %v862 = vpop.f32.mrb[0].mxu0
    %863 = vmatprep.mubr.bf16.mxu0 0
    %864 = vmatmul.mubr.bf16.gmra.mrb[0].mxu0 %v808
    %v865 = vpop.f32.mrb[0].mxu0
    %v866 = vadd.f32 0.0, %v865
    %v867 = vpop.f32.mrb[0].mxu0
    %v868 = vpop.f32.mrb[0].mxu0
    %v869 = vadd.f32 0.0, %v868
    %v870 = vpop.f32.mrb[0].mxu0
    %871 = vmatprep.mubr.bf16.mxu0 0
    %872 = vmatmul.mubr.bf16.gmra.mrb[0].mxu0 %v809
    %v873 = vpop.f32.mrb[0].mxu0
    %v874 = vadd.f32 0.0, %v873
    %v875 = vpop.f32.mrb[0].mxu0
    %v876 = vpop.f32.mrb[0].mxu0
    %v877 = vadd.f32 0.0, %v876
    %v878 = vpop.f32.mrb[0].mxu0
    %879 = vmatprep.mubr.bf16.mxu0 0
    %880 = vmatmul.mubr.bf16.gmra.mrb[0].mxu0 %v810
    %v881 = vpop.f32.mrb[0].mxu0
    %v882 = vadd.f32 0.0, %v881
    %v883 = vpop.f32.mrb[0].mxu0
    %v884 = vpop.f32.mrb[0].mxu0
    %v885 = vadd.f32 0.0, %v884
    %v886 = vpop.f32.mrb[0].mxu0
    %887 = vmatprep.mubr.bf16.mxu0 0
    %888 = vmatmul.mubr.bf16.gmra.mrb[0].mxu0 %v811
    %v889 = vpop.f32.mrb[0].mxu0
    %v890 = vadd.f32 0.0, %v889
    %v891 = vpop.f32.mrb[0].mxu0
    %v892 = vpop.f32.mrb[0].mxu0
    %v893 = vadd.f32 0.0, %v892
    %v894 = vpop.f32.mrb[0].mxu0
    %895 = vmatprep.mubr.bf16.mxu0 0
    %896 = vmatmul.mubr.bf16.gmra.mrb[0].mxu0 %v812
    %v897 = vpop.f32.mrb[0].mxu0
    %v898 = vadd.f32 0.0, %v897
    %v899 = vpop.f32.mrb[0].mxu0
    %v900 = vpop.f32.mrb[0].mxu0
    %v901 = vadd.f32 0.0, %v900
    %v902 = vpop.f32.mrb[0].mxu0
    %903 = vmatprep.mubr.bf16.mxu0 0
    %904 = vmatmul.mubr.bf16.gmra.mrb[0].mxu0 %v813
    %v905 = vpop.f32.mrb[0].mxu0
    %v906 = vadd.f32 0.0, %v905
    %v907 = vpop.f32.mrb[0].mxu0
    %v908 = vpop.f32.mrb[0].mxu0
    %v909 = vadd.f32 0.0, %v908
    %v910 = vpop.f32.mrb[0].mxu0
    %911 = vmatprep.mubr.bf16.mxu0 0
    %912 = vmatmul.mubr.bf16.gmra.mrb[0].mxu0 %v814
    %v913 = vpop.f32.mrb[0].mxu0
    %v914 = vadd.f32 0.0, %v913
    %v915 = vpop.f32.mrb[0].mxu0
    %v916 = vpop.f32.mrb[0].mxu0
    %v917 = vadd.f32 0.0, %v916
    %v918 = vpop.f32.mrb[0].mxu0
    %919 = vdwg.mxu0
    %v920 = vpack.c.bf16 %v861, %v858
    %v921 = vpack.c.bf16 %v869, %v866
    %v922 = vpack.c.bf16 %v877, %v874
    %v923 = vpack.c.bf16 %v885, %v882
    %v924 = vpack.c.bf16 %v893, %v890
    %v925 = vpack.c.bf16 %v901, %v898
    %v926 = vpack.c.bf16 %v909, %v906
    %v927 = vpack.c.bf16 %v917, %v914
    %928 = vmatprep.subr.bf16.mxu0 0
    %929 = vmatpush1.bf16.msra.mxu0 %v920
    %930 = vmatprep.subr.bf16.mxu0 0
    %931 = vmatpush1.bf16.msra.mxu0 %v921
    %932 = vmatprep.subr.bf16.mxu0 0
    %933 = vmatpush1.bf16.msra.mxu0 %v922
    %934 = vmatprep.subr.bf16.mxu0 0
    %935 = vmatpush1.bf16.msra.mxu0 %v923
    %936 = vmatprep.subr.bf16.mxu0 0
    %937 = vmatpush1.bf16.msra.mxu0 %v924
    %938 = vmatprep.subr.bf16.mxu0 0
    %939 = vmatpush1.bf16.msra.mxu0 %v925
    %940 = vmatprep.subr.bf16.mxu0 0
    %941 = vmatpush1.bf16.msra.mxu0 %v926
    %942 = vmatprep.subr.bf16.mxu0 0
    %943 = vmatpush1.bf16.msra.mxu0 %v927
    %944 = vmatprep.subr.bf16.mxu0 0
    %945 = vmatpush1.bf16.msra.mxu0 0
    %946 = vmatprep.subr.bf16.mxu0 0
    %947 = vmatpush1.bf16.msra.mxu0 0
    %948 = vmatprep.subr.bf16.mxu0 0
    %949 = vmatpush1.bf16.msra.mxu0 0
    %950 = vmatprep.subr.bf16.mxu0 0
    %951 = vmatpush1.bf16.msra.mxu0 0
    %952 = vmatprep.subr.bf16.mxu0 0
    %953 = vmatpush1.bf16.msra.mxu0 0
    %954 = vmatprep.subr.bf16.mxu0 0
    %955 = vmatpush1.bf16.msra.mxu0 0
    %956 = vmatprep.subr.bf16.mxu0 0
    %957 = vmatpush1.bf16.msra.mxu0 0
    %958 = vmatprep.subr.bf16.mxu0 0
    %959 = vmatpush1.bf16.msra.mxu0 0
    %960 = vmatprep.mubr.bf16.mxu0 0
    %961 = vmatmul.mubr.bf16.gmra.mrb[0].mxu0 %v807
    %v962 = vpop.f32.mrb[0].mxu0
    %v963 = vadd.f32 0.0, %v962
    %v964 = vpop.f32.mrb[0].mxu0
    %v965 = vpop.f32.mrb[0].mxu0
    %v966 = vadd.f32 0.0, %v965
    %v967 = vpop.f32.mrb[0].mxu0
    %968 = vmatprep.mubr.bf16.mxu0 0
    %969 = vmatmul.mubr.bf16.gmra.mrb[0].mxu0 %v808
    %v970 = vpop.f32.mrb[0].mxu0
    %v971 = vadd.f32 0.0, %v970
    %v972 = vpop.f32.mrb[0].mxu0
    %v973 = vpop.f32.mrb[0].mxu0
    %v974 = vadd.f32 0.0, %v973
    %v975 = vpop.f32.mrb[0].mxu0
    %976 = vmatprep.mubr.bf16.mxu0 0
    %977 = vmatmul.mubr.bf16.gmra.mrb[0].mxu0 %v809
    %v978 = vpop.f32.mrb[0].mxu0
    %v979 = vadd.f32 0.0, %v978
    %v980 = vpop.f32.mrb[0].mxu0
    %v981 = vpop.f32.mrb[0].mxu0
    %v982 = vadd.f32 0.0, %v981
    %v983 = vpop.f32.mrb[0].mxu0
    %984 = vmatprep.mubr.bf16.mxu0 0
    %985 = vmatmul.mubr.bf16.gmra.mrb[0].mxu0 %v810
    %v986 = vpop.f32.mrb[0].mxu0
    %v987 = vadd.f32 0.0, %v986
    %v988 = vpop.f32.mrb[0].mxu0
    %v989 = vpop.f32.mrb[0].mxu0
    %v990 = vadd.f32 0.0, %v989
    %v991 = vpop.f32.mrb[0].mxu0
    %992 = vmatprep.mubr.bf16.mxu0 0
    %993 = vmatmul.mubr.bf16.gmra.mrb[0].mxu0 %v811
    %v994 = vpop.f32.mrb[0].mxu0
    %v995 = vadd.f32 0.0, %v994
    %v996 = vpop.f32.mrb[0].mxu0
    %v997 = vpop.f32.mrb[0].mxu0
    %v998 = vadd.f32 0.0, %v997
    %v999 = vpop.f32.mrb[0].mxu0
    %1000 = vmatprep.mubr.bf16.mxu0 0
    %1001 = vmatmul.mubr.bf16.gmra.mrb[0].mxu0 %v812
    %v1002 = vpop.f32.mrb[0].mxu0
    %v1003 = vadd.f32 0.0, %v1002
    %v1004 = vpop.f32.mrb[0].mxu0
    %v1005 = vpop.f32.mrb[0].mxu0
    %v1006 = vadd.f32 0.0, %v1005
    %v1007 = vpop.f32.mrb[0].mxu0
    %1008 = vmatprep.mubr.bf16.mxu0 0
    %1009 = vmatmul.mubr.bf16.gmra.mrb[0].mxu0 %v813
    %v1010 = vpop.f32.mrb[0].mxu0
    %v1011 = vadd.f32 0.0, %v1010
    %v1012 = vpop.f32.mrb[0].mxu0
    %v1013 = vpop.f32.mrb[0].mxu0
    %v1014 = vadd.f32 0.0, %v1013
    %v1015 = vpop.f32.mrb[0].mxu0
    %1016 = vmatprep.mubr.bf16.mxu0 0
    %1017 = vmatmul.mubr.bf16.gmra.mrb[0].mxu0 %v814
    %v1018 = vpop.f32.mrb[0].mxu0
    %v1019 = vadd.f32 0.0, %v1018
    %v1020 = vpop.f32.mrb[0].mxu0
    %v1021 = vpop.f32.mrb[0].mxu0
    %v1022 = vadd.f32 0.0, %v1021
    %v1023 = vpop.f32.mrb[0].mxu0
    %1024 = vdwg.mxu0
    %v1025 = vpack.c.bf16 %v966, %v963
    %v1026 = vpack.c.bf16 %v974, %v971
    %v1027 = vpack.c.bf16 %v982, %v979
    %v1028 = vpack.c.bf16 %v990, %v987
    %v1029 = vpack.c.bf16 %v998, %v995
    %v1030 = vpack.c.bf16 %v1006, %v1003
    %v1031 = vpack.c.bf16 %v1014, %v1011
    %v1032 = vpack.c.bf16 %v1022, %v1019
    %v1033 = vld [vmem:[#allocation11] sm:$0xf]
    %v1034 = vld [vmem:[#allocation11 + $0x4] sm:$0xf]
    %v1035 = vld [vmem:[#allocation11 + $0x8] sm:$0xf]
    %v1036 = vld [vmem:[#allocation11 + $0xc] sm:$0xf]
    %v1037 = vld [vmem:[#allocation11 + $0x10] sm:$0xf]
    %v1038 = vld [vmem:[#allocation11 + $0x14] sm:$0xf]
    %v1039 = vld [vmem:[#allocation11 + $0x18] sm:$0xf]
    %v1040 = vld [vmem:[#allocation11 + $0x1c] sm:$0xf]
    %v1041 = vld [vmem:[#allocation11 + $0x20] sm:$0xf]
    %v1042 = vld [vmem:[#allocation11 + $0x24] sm:$0xf]
    %v1043 = vld [vmem:[#allocation11 + $0x28] sm:$0xf]
    %v1044 = vld [vmem:[#allocation11 + $0x2c] sm:$0xf]
    %v1045 = vld [vmem:[#allocation11 + $0x30] sm:$0xf]
    %v1046 = vld [vmem:[#allocation11 + $0x34] sm:$0xf]
    %v1047 = vld [vmem:[#allocation11 + $0x38] sm:$0xf]
    %v1048 = vld [vmem:[#allocation11 + $0x3c] sm:$0xf]
    %v1065 = vunpack.c.l.b16 %v1033
    %v1066 = vunpack.c.l.b16 %v1034
    %v1067 = vunpack.c.l.b16 %v1035
    %v1068 = vunpack.c.l.b16 %v1036
    %v1069 = vunpack.c.l.b16 %v1037
    %v1070 = vunpack.c.l.b16 %v1038
    %v1071 = vunpack.c.l.b16 %v1039
    %v1072 = vunpack.c.l.b16 %v1040
    %v1073 = vunpack.c.l.b16 %v1041
    %v1074 = vunpack.c.l.b16 %v1042
    %v1075 = vunpack.c.l.b16 %v1043
    %v1076 = vunpack.c.l.b16 %v1044
    %v1077 = vunpack.c.l.b16 %v1045
    %v1078 = vunpack.c.l.b16 %v1046
    %v1079 = vunpack.c.l.b16 %v1047
    %v1080 = vunpack.c.l.b16 %v1048
    %v1081 = vpack.c.b16 %v1066, %v1065
    %v1082 = vpack.c.b16 %v1068, %v1067
    %v1083 = vpack.c.b16 %v1070, %v1069
    %v1084 = vpack.c.b16 %v1072, %v1071
    %v1085 = vpack.c.b16 %v1074, %v1073
    %v1086 = vpack.c.b16 %v1076, %v1075
    %v1087 = vpack.c.b16 %v1078, %v1077
    %v1088 = vpack.c.b16 %v1080, %v1079
    %1097 = vmatprep.subr.bf16.mxu0 0
    %1098 = vmatpush1.bf16.msra.mxu0 %v1025
    %1099 = vmatprep.subr.bf16.mxu0 0
    %1100 = vmatpush1.bf16.msra.mxu0 %v1026
    %1101 = vmatprep.subr.bf16.mxu0 0
    %1102 = vmatpush1.bf16.msra.mxu0 %v1027
    %1103 = vmatprep.subr.bf16.mxu0 0
    %1104 = vmatpush1.bf16.msra.mxu0 %v1028
    %1105 = vmatprep.subr.bf16.mxu0 0
    %1106 = vmatpush1.bf16.msra.mxu0 %v1029
    %1107 = vmatprep.subr.bf16.mxu0 0
    %1108 = vmatpush1.bf16.msra.mxu0 %v1030
    %1109 = vmatprep.subr.bf16.mxu0 0
    %1110 = vmatpush1.bf16.msra.mxu0 %v1031
    %1111 = vmatprep.subr.bf16.mxu0 0
    %1112 = vmatpush1.bf16.msra.mxu0 %v1032
    %1113 = vmatprep.subr.bf16.mxu0 0
    %1114 = vmatpush1.bf16.msra.mxu0 0
    %1115 = vmatprep.subr.bf16.mxu0 0
    %1116 = vmatpush1.bf16.msra.mxu0 0
    %1117 = vmatprep.subr.bf16.mxu0 0
    %1118 = vmatpush1.bf16.msra.mxu0 0
    %1119 = vmatprep.subr.bf16.mxu0 0
    %1120 = vmatpush1.bf16.msra.mxu0 0
    %1121 = vmatprep.subr.bf16.mxu0 0
    %1122 = vmatpush1.bf16.msra.mxu0 0
    %1123 = vmatprep.subr.bf16.mxu0 0
    %1124 = vmatpush1.bf16.msra.mxu0 0
    %1125 = vmatprep.subr.bf16.mxu0 0
    %1126 = vmatpush1.bf16.msra.mxu0 0
    %1127 = vmatprep.subr.bf16.mxu0 0
    %1128 = vmatpush1.bf16.msra.mxu0 0
    %1129 = vmatprep.mubr.bf16.mxu0 0
    %1130 = vmatmul.mubr.bf16.gmra.mrb[0].mxu0 %v1081
    %v1131 = vpop.f32.mrb[0].mxu0
    %v1132 = vadd.f32 0.0, %v1131
    %v1133 = vpop.f32.mrb[0].mxu0
    %v1134 = vpop.f32.mrb[0].mxu0
    %v1135 = vadd.f32 0.0, %v1134
    %v1136 = vpop.f32.mrb[0].mxu0
    %1137 = vmatprep.mubr.bf16.mxu0 0
    %1138 = vmatmul.mubr.bf16.gmra.mrb[0].mxu0 %v1082
    %v1139 = vpop.f32.mrb[0].mxu0
    %v1140 = vadd.f32 0.0, %v1139
    %v1141 = vpop.f32.mrb[0].mxu0
    %v1142 = vpop.f32.mrb[0].mxu0
    %v1143 = vadd.f32 0.0, %v1142
    %v1144 = vpop.f32.mrb[0].mxu0
    %1145 = vmatprep.mubr.bf16.mxu0 0
    %1146 = vmatmul.mubr.bf16.gmra.mrb[0].mxu0 %v1083
    %v1147 = vpop.f32.mrb[0].mxu0
    %v1148 = vadd.f32 0.0, %v1147
    %v1149 = vpop.f32.mrb[0].mxu0
    %v1150 = vpop.f32.mrb[0].mxu0
    %v1151 = vadd.f32 0.0, %v1150
    %v1152 = vpop.f32.mrb[0].mxu0
    %1153 = vmatprep.mubr.bf16.mxu0 0
    %1154 = vmatmul.mubr.bf16.gmra.mrb[0].mxu0 %v1084
    %v1155 = vpop.f32.mrb[0].mxu0
    %v1156 = vadd.f32 0.0, %v1155
    %v1157 = vpop.f32.mrb[0].mxu0
    %v1158 = vpop.f32.mrb[0].mxu0
    %v1159 = vadd.f32 0.0, %v1158
    %v1160 = vpop.f32.mrb[0].mxu0
    %1161 = vmatprep.mubr.bf16.mxu0 0
    %1162 = vmatmul.mubr.bf16.gmra.mrb[0].mxu0 %v1085
    %v1163 = vpop.f32.mrb[0].mxu0
    %v1164 = vadd.f32 0.0, %v1163
    %v1165 = vpop.f32.mrb[0].mxu0
    %v1166 = vpop.f32.mrb[0].mxu0
    %v1167 = vadd.f32 0.0, %v1166
    %v1168 = vpop.f32.mrb[0].mxu0
    %1169 = vmatprep.mubr.bf16.mxu0 0
    %1170 = vmatmul.mubr.bf16.gmra.mrb[0].mxu0 %v1086
    %v1171 = vpop.f32.mrb[0].mxu0
    %v1172 = vadd.f32 0.0, %v1171
    %v1173 = vpop.f32.mrb[0].mxu0
    %v1174 = vpop.f32.mrb[0].mxu0
    %v1175 = vadd.f32 0.0, %v1174
    %v1176 = vpop.f32.mrb[0].mxu0
    %1177 = vmatprep.mubr.bf16.mxu0 0
    %1178 = vmatmul.mubr.bf16.gmra.mrb[0].mxu0 %v1087
    %v1179 = vpop.f32.mrb[0].mxu0
    %v1180 = vadd.f32 0.0, %v1179
    %v1181 = vpop.f32.mrb[0].mxu0
    %v1182 = vpop.f32.mrb[0].mxu0
    %v1183 = vadd.f32 0.0, %v1182
    %v1184 = vpop.f32.mrb[0].mxu0
    %1185 = vmatprep.mubr.bf16.mxu0 0
    %1186 = vmatmul.mubr.bf16.gmra.mrb[0].mxu0 %v1088
    %v1187 = vpop.f32.mrb[0].mxu0
    %v1188 = vadd.f32 0.0, %v1187
    %v1189 = vpop.f32.mrb[0].mxu0
    %v1190 = vpop.f32.mrb[0].mxu0
    %v1191 = vadd.f32 0.0, %v1190
    %v1192 = vpop.f32.mrb[0].mxu0
    %1193 = vdwg.mxu0
    %v1194 = vpack.c.bf16 %v1135, %v1132
    %v1195 = vpack.c.bf16 %v1143, %v1140
    %v1196 = vpack.c.bf16 %v1151, %v1148
    %v1197 = vpack.c.bf16 %v1159, %v1156
    %v1198 = vpack.c.bf16 %v1167, %v1164
    %v1199 = vpack.c.bf16 %v1175, %v1172
    %v1200 = vpack.c.bf16 %v1183, %v1180
    %v1201 = vpack.c.bf16 %v1191, %v1188
    %v1202 = vld [vmem:[#allocation14] sm:$0xf]
    %v1203 = vld [vmem:[#allocation14 + $0x4] sm:$0xf]
    %v1204 = vld [vmem:[#allocation14 + $0x8] sm:$0xf]
    %v1205 = vld [vmem:[#allocation14 + $0xc] sm:$0xf]
    %v1206 = vld [vmem:[#allocation14 + $0x10] sm:$0xf]
    %v1207 = vld [vmem:[#allocation14 + $0x14] sm:$0xf]
    %v1208 = vld [vmem:[#allocation14 + $0x18] sm:$0xf]
    %v1209 = vld [vmem:[#allocation14 + $0x1c] sm:$0xf]
    %v1210 = vld [vmem:[#allocation14 + $0x20] sm:$0xf]
    %v1211 = vld [vmem:[#allocation14 + $0x24] sm:$0xf]
    %v1212 = vld [vmem:[#allocation14 + $0x28] sm:$0xf]
    %v1213 = vld [vmem:[#allocation14 + $0x2c] sm:$0xf]
    %v1214 = vld [vmem:[#allocation14 + $0x30] sm:$0xf]
    %v1215 = vld [vmem:[#allocation14 + $0x34] sm:$0xf]
    %v1216 = vld [vmem:[#allocation14 + $0x38] sm:$0xf]
    %v1217 = vld [vmem:[#allocation14 + $0x3c] sm:$0xf]
    %v1234 = vunpack.c.l.b16 %v1202
    %v1235 = vunpack.c.l.b16 %v1203
    %v1236 = vunpack.c.l.b16 %v1204
    %v1237 = vunpack.c.l.b16 %v1205
    %v1238 = vunpack.c.l.b16 %v1206
    %v1239 = vunpack.c.l.b16 %v1207
    %v1240 = vunpack.c.l.b16 %v1208
    %v1241 = vunpack.c.l.b16 %v1209
    %v1242 = vunpack.c.l.b16 %v1210
    %v1243 = vunpack.c.l.b16 %v1211
    %v1244 = vunpack.c.l.b16 %v1212
    %v1245 = vunpack.c.l.b16 %v1213
    %v1246 = vunpack.c.l.b16 %v1214
    %v1247 = vunpack.c.l.b16 %v1215
    %v1248 = vunpack.c.l.b16 %v1216
    %v1249 = vunpack.c.l.b16 %v1217
    %v1250 = vpack.c.b16 %v1235, %v1234
    %v1251 = vpack.c.b16 %v1237, %v1236
    %v1252 = vpack.c.b16 %v1239, %v1238
    %v1253 = vpack.c.b16 %v1241, %v1240
    %v1254 = vpack.c.b16 %v1243, %v1242
    %v1255 = vpack.c.b16 %v1245, %v1244
    %v1256 = vpack.c.b16 %v1247, %v1246
    %v1257 = vpack.c.b16 %v1249, %v1248
    %1266 = vmatprep.subr.bf16.mxu0 0
    %1267 = vmatpush1.bf16.msra.mxu0 %v1250
    %1268 = vmatprep.subr.bf16.mxu0 0
    %1269 = vmatpush1.bf16.msra.mxu0 %v1251
    %1270 = vmatprep.subr.bf16.mxu0 0
    %1271 = vmatpush1.bf16.msra.mxu0 %v1252
    %1272 = vmatprep.subr.bf16.mxu0 0
    %1273 = vmatpush1.bf16.msra.mxu0 %v1253
    %1274 = vmatprep.subr.bf16.mxu0 0
    %1275 = vmatpush1.bf16.msra.mxu0 %v1254
    %1276 = vmatprep.subr.bf16.mxu0 0
    %1277 = vmatpush1.bf16.msra.mxu0 %v1255
    %1278 = vmatprep.subr.bf16.mxu0 0
    %1279 = vmatpush1.bf16.msra.mxu0 %v1256
    %1280 = vmatprep.subr.bf16.mxu0 0
    %1281 = vmatpush1.bf16.msra.mxu0 %v1257
    %1282 = vmatprep.subr.bf16.mxu0 0
    %1283 = vmatpush1.bf16.msra.mxu0 0
    %1284 = vmatprep.subr.bf16.mxu0 0
    %1285 = vmatpush1.bf16.msra.mxu0 0
    %1286 = vmatprep.subr.bf16.mxu0 0
    %1287 = vmatpush1.bf16.msra.mxu0 0
    %1288 = vmatprep.subr.bf16.mxu0 0
    %1289 = vmatpush1.bf16.msra.mxu0 0
    %1290 = vmatprep.subr.bf16.mxu0 0
    %1291 = vmatpush1.bf16.msra.mxu0 0
    %1292 = vmatprep.subr.bf16.mxu0 0
    %1293 = vmatpush1.bf16.msra.mxu0 0
    %1294 = vmatprep.subr.bf16.mxu0 0
    %1295 = vmatpush1.bf16.msra.mxu0 0
    %1296 = vmatprep.subr.bf16.mxu0 0
    %1297 = vmatpush1.bf16.msra.mxu0 0
    %1298 = vmatprep.mubr.bf16.mxu0 0
    %1299 = vmatmul.mubr.bf16.gmra.mrb[0].mxu0 %v1194
    %v1300 = vpop.f32.mrb[0].mxu0
    %v1301 = vadd.f32 0.0, %v1300
    %v1302 = vpop.f32.mrb[0].mxu0
    %v1303 = vpop.f32.mrb[0].mxu0
    %v1304 = vadd.f32 0.0, %v1303
    %v1305 = vpop.f32.mrb[0].mxu0
    %1306 = vmatprep.mubr.bf16.mxu0 0
    %1307 = vmatmul.mubr.bf16.gmra.mrb[0].mxu0 %v1195
    %v1308 = vpop.f32.mrb[0].mxu0
    %v1309 = vadd.f32 0.0, %v1308
    %v1310 = vpop.f32.mrb[0].mxu0
    %v1311 = vpop.f32.mrb[0].mxu0
    %v1312 = vadd.f32 0.0, %v1311
    %v1313 = vpop.f32.mrb[0].mxu0
    %1314 = vmatprep.mubr.bf16.mxu0 0
    %1315 = vmatmul.mubr.bf16.gmra.mrb[0].mxu0 %v1196
    %v1316 = vpop.f32.mrb[0].mxu0
    %v1317 = vadd.f32 0.0, %v1316
    %v1318 = vpop.f32.mrb[0].mxu0
    %v1319 = vpop.f32.mrb[0].mxu0
    %v1320 = vadd.f32 0.0, %v1319
    %v1321 = vpop.f32.mrb[0].mxu0
    %1322 = vmatprep.mubr.bf16.mxu0 0
    %1323 = vmatmul.mubr.bf16.gmra.mrb[0].mxu0 %v1197
    %v1324 = vpop.f32.mrb[0].mxu0
    %v1325 = vadd.f32 0.0, %v1324
    %v1326 = vpop.f32.mrb[0].mxu0
    %v1327 = vpop.f32.mrb[0].mxu0
    %v1328 = vadd.f32 0.0, %v1327
    %v1329 = vpop.f32.mrb[0].mxu0
    %1330 = vmatprep.mubr.bf16.mxu0 0
    %1331 = vmatmul.mubr.bf16.gmra.mrb[0].mxu0 %v1198
    %v1332 = vpop.f32.mrb[0].mxu0
    %v1333 = vadd.f32 0.0, %v1332
    %v1334 = vpop.f32.mrb[0].mxu0
    %v1335 = vpop.f32.mrb[0].mxu0
    %v1336 = vadd.f32 0.0, %v1335
    %v1337 = vpop.f32.mrb[0].mxu0
    %1338 = vmatprep.mubr.bf16.mxu0 0
    %1339 = vmatmul.mubr.bf16.gmra.mrb[0].mxu0 %v1199
    %v1340 = vpop.f32.mrb[0].mxu0
    %v1341 = vadd.f32 0.0, %v1340
    %v1342 = vpop.f32.mrb[0].mxu0
    %v1343 = vpop.f32.mrb[0].mxu0
    %v1344 = vadd.f32 0.0, %v1343
    %v1345 = vpop.f32.mrb[0].mxu0
    %1346 = vmatprep.mubr.bf16.mxu0 0
    %1347 = vmatmul.mubr.bf16.gmra.mrb[0].mxu0 %v1200
    %v1348 = vpop.f32.mrb[0].mxu0
    %v1349 = vadd.f32 0.0, %v1348
    %v1350 = vpop.f32.mrb[0].mxu0
    %v1351 = vpop.f32.mrb[0].mxu0
    %v1352 = vadd.f32 0.0, %v1351
    %v1353 = vpop.f32.mrb[0].mxu0
    %1354 = vmatprep.mubr.bf16.mxu0 0
    %1355 = vmatmul.mubr.bf16.gmra.mrb[0].mxu0 %v1201
    %v1356 = vpop.f32.mrb[0].mxu0
    %v1357 = vadd.f32 0.0, %v1356
    %v1358 = vpop.f32.mrb[0].mxu0
    %v1359 = vpop.f32.mrb[0].mxu0
    %v1360 = vadd.f32 0.0, %v1359
    %v1361 = vpop.f32.mrb[0].mxu0
    %1362 = vdwg.mxu0
    %v1363 = vld [vmem:[#allocation13] sm:$0xf]
    %v1364 = vld [vmem:[#allocation13 + $0x4] sm:$0xf]
    %v1365 = vld [vmem:[#allocation13 + $0x8] sm:$0xf]
    %v1366 = vld [vmem:[#allocation13 + $0xc] sm:$0xf]
    %v1367 = vld [vmem:[#allocation13 + $0x10] sm:$0xf]
    %v1368 = vld [vmem:[#allocation13 + $0x14] sm:$0xf]
    %v1369 = vld [vmem:[#allocation13 + $0x18] sm:$0xf]
    %v1370 = vld [vmem:[#allocation13 + $0x1c] sm:$0xf]
    %v1371 = vld [vmem:[#allocation13 + $0x20] sm:$0xf]
    %v1372 = vld [vmem:[#allocation13 + $0x24] sm:$0xf]
    %v1373 = vld [vmem:[#allocation13 + $0x28] sm:$0xf]
    %v1374 = vld [vmem:[#allocation13 + $0x2c] sm:$0xf]
    %v1375 = vld [vmem:[#allocation13 + $0x30] sm:$0xf]
    %v1376 = vld [vmem:[#allocation13 + $0x34] sm:$0xf]
    %v1377 = vld [vmem:[#allocation13 + $0x38] sm:$0xf]
    %v1378 = vld [vmem:[#allocation13 + $0x3c] sm:$0xf]
    %v1379 = vpack.c.bf16 %v1304, %v1301
    %v1380 = vpack.c.bf16 %v1312, %v1309
    %v1381 = vpack.c.bf16 %v1320, %v1317
    %v1382 = vpack.c.bf16 %v1328, %v1325
    %v1383 = vpack.c.bf16 %v1336, %v1333
    %v1384 = vpack.c.bf16 %v1344, %v1341
    %v1385 = vpack.c.bf16 %v1352, %v1349
    %v1386 = vpack.c.bf16 %v1360, %v1357
    %v1387 = vld [vmem:[%s9] sm:$0x1]
    %v1389 = vlaneseq
    %v1390 = vshrl.u32 %v1389, 7
    %v1391 = vsub.s32 0, %v1390
    %v1392 = vrot.slane %v1387, %v1391
    %v1410 = vunpack.c.l.b16 %v1363
    %v1411 = vunpack.c.l.b16 %v1364
    %v1412 = vunpack.c.l.b16 %v1365
    %v1413 = vunpack.c.l.b16 %v1366
    %v1414 = vunpack.c.l.b16 %v1367
    %v1415 = vunpack.c.l.b16 %v1368
    %v1416 = vunpack.c.l.b16 %v1369
    %v1417 = vunpack.c.l.b16 %v1370
    %v1418 = vunpack.c.l.b16 %v1371
    %v1419 = vunpack.c.l.b16 %v1372
    %v1420 = vunpack.c.l.b16 %v1373
    %v1421 = vunpack.c.l.b16 %v1374
    %v1422 = vunpack.c.l.b16 %v1375
    %v1423 = vunpack.c.l.b16 %v1376
    %v1424 = vunpack.c.l.b16 %v1377
    %v1425 = vunpack.c.l.b16 %v1378
    %v1426 = vpack.c.b16 %v1411, %v1410
    %v1427 = vpack.c.b16 %v1413, %v1412
    %v1428 = vpack.c.b16 %v1415, %v1414
    %v1429 = vpack.c.b16 %v1417, %v1416
    %v1430 = vpack.c.b16 %v1419, %v1418
    %v1431 = vpack.c.b16 %v1421, %v1420
    %v1432 = vpack.c.b16 %v1423, %v1422
    %v1433 = vpack.c.b16 %v1425, %v1424
    %1442 = vmatprep.subr.bf16.mxu0 0
    %1443 = vmatpush1.bf16.msra.mxu0 %v1379
    %1444 = vmatprep.subr.bf16.mxu0 0
    %1445 = vmatpush1.bf16.msra.mxu0 %v1380
    %1446 = vmatprep.subr.bf16.mxu0 0
    %1447 = vmatpush1.bf16.msra.mxu0 %v1381
    %1448 = vmatprep.subr.bf16.mxu0 0
    %1449 = vmatpush1.bf16.msra.mxu0 %v1382
    %1450 = vmatprep.subr.bf16.mxu0 0
    %1451 = vmatpush1.bf16.msra.mxu0 %v1383
    %1452 = vmatprep.subr.bf16.mxu0 0
    %1453 = vmatpush1.bf16.msra.mxu0 %v1384
    %1454 = vmatprep.subr.bf16.mxu0 0
    %1455 = vmatpush1.bf16.msra.mxu0 %v1385
    %1456 = vmatprep.subr.bf16.mxu0 0
    %1457 = vmatpush1.bf16.msra.mxu0 %v1386
    %1458 = vmatprep.subr.bf16.mxu0 0
    %1459 = vmatpush1.bf16.msra.mxu0 0
    %1460 = vmatprep.subr.bf16.mxu0 0
    %1461 = vmatpush1.bf16.msra.mxu0 0
    %1462 = vmatprep.subr.bf16.mxu0 0
    %1463 = vmatpush1.bf16.msra.mxu0 0
    %1464 = vmatprep.subr.bf16.mxu0 0
    %1465 = vmatpush1.bf16.msra.mxu0 0
    %1466 = vmatprep.subr.bf16.mxu0 0
    %1467 = vmatpush1.bf16.msra.mxu0 0
    %1468 = vmatprep.subr.bf16.mxu0 0
    %1469 = vmatpush1.bf16.msra.mxu0 0
    %1470 = vmatprep.subr.bf16.mxu0 0
    %1471 = vmatpush1.bf16.msra.mxu0 0
    %1472 = vmatprep.subr.bf16.mxu0 0
    %1473 = vmatpush1.bf16.msra.mxu0 0
    %1474 = vmatprep.mubr.bf16.mxu0 0
    %1475 = vmatmul.mubr.bf16.gmra.mrb[0].mxu0 %v1426
    %v1476 = vpop.f32.mrb[0].mxu0
    %v1477 = vadd.f32 %v1392, %v1476
    %v1478 = vpop.f32.mrb[0].mxu0
    %v1479 = vpop.f32.mrb[0].mxu0
    %v1480 = vadd.f32 %v1392, %v1479
    %v1481 = vpop.f32.mrb[0].mxu0
    %1482 = vmatprep.mubr.bf16.mxu0 0
    %1483 = vmatmul.mubr.bf16.gmra.mrb[0].mxu0 %v1427
    %v1484 = vpop.f32.mrb[0].mxu0
    %v1485 = vadd.f32 %v1392, %v1484
    %v1486 = vpop.f32.mrb[0].mxu0
    %v1487 = vpop.f32.mrb[0].mxu0
    %v1488 = vadd.f32 %v1392, %v1487
    %v1489 = vpop.f32.mrb[0].mxu0
    %1490 = vmatprep.mubr.bf16.mxu0 0
    %1491 = vmatmul.mubr.bf16.gmra.mrb[0].mxu0 %v1428
    %v1492 = vpop.f32.mrb[0].mxu0
    %v1493 = vadd.f32 %v1392, %v1492
    %v1494 = vpop.f32.mrb[0].mxu0
    %v1495 = vpop.f32.mrb[0].mxu0
    %v1496 = vadd.f32 %v1392, %v1495
    %v1497 = vpop.f32.mrb[0].mxu0
    %1498 = vmatprep.mubr.bf16.mxu0 0
    %1499 = vmatmul.mubr.bf16.gmra.mrb[0].mxu0 %v1429
    %v1500 = vpop.f32.mrb[0].mxu0
    %v1501 = vadd.f32 %v1392, %v1500
    %v1502 = vpop.f32.mrb[0].mxu0
    %v1503 = vpop.f32.mrb[0].mxu0
    %v1504 = vadd.f32 %v1392, %v1503
    %v1505 = vpop.f32.mrb[0].mxu0
    %1506 = vmatprep.mubr.bf16.mxu0 0
    %1507 = vmatmul.mubr.bf16.gmra.mrb[0].mxu0 %v1430
    %v1508 = vpop.f32.mrb[0].mxu0
    %v1509 = vadd.f32 %v1392, %v1508
    %v1510 = vpop.f32.mrb[0].mxu0
    %v1511 = vpop.f32.mrb[0].mxu0
    %v1512 = vadd.f32 %v1392, %v1511
    %v1513 = vpop.f32.mrb[0].mxu0
    %1514 = vmatprep.mubr.bf16.mxu0 0
    %1515 = vmatmul.mubr.bf16.gmra.mrb[0].mxu0 %v1431
    %v1516 = vpop.f32.mrb[0].mxu0
    %v1517 = vadd.f32 %v1392, %v1516
    %v1518 = vpop.f32.mrb[0].mxu0
    %v1519 = vpop.f32.mrb[0].mxu0
    %v1520 = vadd.f32 %v1392, %v1519
    %v1521 = vpop.f32.mrb[0].mxu0
    %1522 = vmatprep.mubr.bf16.mxu0 0
    %1523 = vmatmul.mubr.bf16.gmra.mrb[0].mxu0 %v1432
    %v1524 = vpop.f32.mrb[0].mxu0
    %v1525 = vadd.f32 %v1392, %v1524
    %v1526 = vpop.f32.mrb[0].mxu0
    %v1527 = vpop.f32.mrb[0].mxu0
    %v1528 = vadd.f32 %v1392, %v1527
    %v1529 = vpop.f32.mrb[0].mxu0
    %1530 = vmatprep.mubr.bf16.mxu0 0
    %1531 = vmatmul.mubr.bf16.gmra.mrb[0].mxu0 %v1433
    %v1532 = vpop.f32.mrb[0].mxu0
    %v1533 = vadd.f32 %v1392, %v1532
    %v1534 = vpop.f32.mrb[0].mxu0
    %v1535 = vpop.f32.mrb[0].mxu0
    %v1536 = vadd.f32 %v1392, %v1535
    %v1537 = vpop.f32.mrb[0].mxu0
    %1538 = vdwg.mxu0
    %1539 = vst [vmem:[#allocation16] sm:$0xff] %v1477
    %1540 = vst [vmem:[#allocation16 + $0x8] sm:$0xff] %v1480
    %1541 = vst [vmem:[#allocation16 + $0x10] sm:$0xff] %v1485
    %1542 = vst [vmem:[#allocation16 + $0x18] sm:$0xff] %v1488
    %1543 = vst [vmem:[#allocation16 + $0x20] sm:$0xff] %v1493
    %1544 = vst [vmem:[#allocation16 + $0x28] sm:$0xff] %v1496
    %1545 = vst [vmem:[#allocation16 + $0x30] sm:$0xff] %v1501
    %1546 = vst [vmem:[#allocation16 + $0x38] sm:$0xff] %v1504
    %1547 = vst [vmem:[#allocation16 + $0x40] sm:$0xff] %v1509
    %1548 = vst [vmem:[#allocation16 + $0x48] sm:$0xff] %v1512
    %1549 = vst [vmem:[#allocation16 + $0x50] sm:$0xff] %v1517
    %1550 = vst [vmem:[#allocation16 + $0x58] sm:$0xff] %v1520
    %1551 = vst [vmem:[#allocation16 + $0x60] sm:$0xff] %v1525
    %1552 = vst [vmem:[#allocation16 + $0x68] sm:$0xff] %v1528
    %1553 = vst [vmem:[#allocation16 + $0x70] sm:$0xff] %v1533
    %1554 = vst [vmem:[#allocation16 + $0x78] sm:$0xff] %v1536
    // Predicated region
    $region74: #{tpu_custom_call.1} parent=1 // pred_check
      _
    $region75: #{tpu_custom_call.1} parent=1 // pred_check_branch
      %1556 = sbr.rel (0) target = $region77
    $region76: #{tpu_custom_call.1} parent=1 // pred_region
      %s1558 = ssub.s32 2048, 2048
      %1559 = vsyncadd [#allocation4], %s1558
      %s1560 = sshll.u32 [#allocation16], 4
      %s1561 = int_to_ptr.vmem [resolvable:$true] %s1560
      %1566 = dma.vmem_to_hbm [thread:$0]  %s1561, 2048, %s10, [#allocation4], 128, 128, 8
    $region77: #{tpu_custom_call.1} parent=1 // pred_fallthru
      _
    // Predicated region
    $region78: #{tpu_custom_call.1} parent=1 // pred_check
      _
    $region79: #{tpu_custom_call.1} parent=1 // pred_check_branch
      %1568 = sbr.rel (0) target = $region81
    $region80: #{tpu_custom_call.1} parent=1 // pred_region
      %s1570 = ssub.s32 2048, 2048
      %1571 = vsyncadd [#allocation18], %s1570
      %s1572 = sshll.u32 [#allocation17], 4
      %s1573 = int_to_ptr.vmem [resolvable:$true] %s1572
      %1578 = dma.vmem_to_hbm [thread:$0]  %s1573, 2048, %s11, [#allocation18], 128, 128, 8
    $region81: #{tpu_custom_call.1} parent=1 // pred_fallthru
      _
    // Predicated region
    $region82: #{tpu_custom_call.1} parent=1 // pred_check
      _
    $region83: #{tpu_custom_call.1} parent=1 // pred_check_branch
      %1580 = sbr.rel (0) target = $region85
    $region84: #{tpu_custom_call.1} parent=1 // pred_region
      %1581 = dma.done [#allocation4], 2048
    $region85: #{tpu_custom_call.1} parent=1 // pred_fallthru
      _
    // Predicated region
    $region86: #{tpu_custom_call.1} parent=1 // pred_check
      _
    $region87: #{tpu_custom_call.1} parent=1 // pred_check_branch
      %1583 = sbr.rel (0) target = $region89
    $region88: #{tpu_custom_call.1} parent=1 // pred_region
      %1584 = dma.done [#allocation18], 2048
    $region89: #{tpu_custom_call.1} parent=1 // pred_fallthru
      _
    %1585 = vsyncpa [#allocation3], 1
    %1586 = vsyncpa [#allocation6], 1
    %1587 = vsyncpa [#allocation9], 1
    %1588 = vsyncpa [#allocation12], 1
    %1589 = vsyncpa [#allocation15], 1
    %1590 = vsyncpa [#allocation4], 1
    %1591 = vsyncpa [#allocation18], 1

</llo_original>
